<compile_context>
chip_gen: v7x
topology: tpu7x:2x2x1
jax: 0.10.0
libtpu: 0.0.40
codegen_flags: <defaults>
</compile_context>

<pallas_src>
import functools

import jax
import jax.numpy as jnp
import numpy as np
from jax import lax
from jax.experimental import pallas as pl
from jax.experimental.pallas import tpu as pltpu


# -----------------------------------------------------------------------------
# Pallas kernels: fused 3x3-conv + BN + ReLU + 1x1-conv + BN + ReLU + sigmoid.
# -----------------------------------------------------------------------------
def _fuse_head(slab_fn, w1_ref, sh1_ref, w2_ref, sh2_ref, mask_ref, cin, w):
    """Shared kernel body.

    slab_fn(off) -> (cin, TILE) bf16 slice of the flattened padded input at
    lane offset `off` (off = dy*W + dx for tap (dy, dx)).
    """
    mask_l = mask_ref[0:1, :]   # zero where output column == 0     (bf16 0/1)
    mask_r = mask_ref[1:2, :]   # zero where output column == W - 1 (bf16 0/1)

    acc = None
    for k in range(9):                       # unrolled: 9 accumulated matmuls
        dy, dx = divmod(k, 3)
        slab = slab_fn(dy * w + dx)          # (cin, TILE) bf16
        if dx == 0:                          # left neighbour of column 0 is pad
            slab = slab * mask_l
        elif dx == 2:                        # right neighbour of column W-1 is pad
            slab = slab * mask_r
        wk = w1_ref[:, k * cin:(k + 1) * cin]        # (8, cin) bf16, scale-folded
        part = jnp.dot(wk, slab, preferred_element_type=jnp.float32)
        acc = part if acc is None else acc + part

    hidden = jnp.maximum(acc + sh1_ref[...], 0.0)            # (8, TILE) f32
    y = jnp.dot(w2_ref[...], hidden.astype(jnp.bfloat16),
                preferred_element_type=jnp.float32) + sh2_ref[...]
    y = jnp.maximum(y, 0.0)                                   # (2, TILE) f32

    # softmax over 2 channels, channel 0  ==  sigmoid(y0 - y1)
    anom = pl.reciprocal(1.0 + jnp.exp(y[1:2, :] - y[0:1, :]), approx=False)
    return y, anom


def _fuse_kernel_tiled(xmain_ref, xhalo_ref, w1_ref, sh1_ref, w2_ref, sh2_ref,
                       mask_ref, logits_ref, anom_ref, win_ref,
                       *, cin, w, tile_j, halo_blk):
    # Assemble the tile window (main block + small halo block) in VMEM.
    win_ref[:, 0:tile_j] = xmain_ref[...]
    win_ref[:, tile_j:tile_j + halo_blk] = xhalo_ref[...]

    def slab_fn(off):
        return win_ref[:, off:off + tile_j]

    y, anom = _fuse_head(slab_fn, w1_ref, sh1_ref, w2_ref, sh2_ref, mask_ref,
                         cin, w)
    logits_ref[...] = y          # (2, TILE)  lane-dense store
    anom_ref[...] = anom         # (1, TILE)  lane-dense store


def _fuse_kernel_full(x_ref, w1_ref, sh1_ref, w2_ref, sh2_ref, mask_ref,
                      logits_ref, anom_ref, *, cin, w, hw):
    def slab_fn(off):
        return x_ref[:, off:off + hw]

    y, anom = _fuse_head(slab_fn, w1_ref, sh1_ref, w2_ref, sh2_ref, mask_ref,
                         cin, w)
    logits_ref[...] = y
    anom_ref[...] = anom


def _boundary_mask(tile_j, w):
    cols = np.arange(tile_j) % w
    m = np.stack([(cols != 0), (cols != w - 1)]).astype(np.float32)
    return jnp.asarray(m).astype(jnp.bfloat16)     # (2, tile_j)


def fuse_forward_pallas(fused_nchw, w1_mat, shift1, w2_mat, shift2, *,
                        max_tile_lanes=8192,
                        vmem_limit_bytes=48 * 1024 * 1024):
    """fused_nchw: (N, Cin, H, W) f32.  w1_mat: (8, 9*Cin) BN-scale-folded,
    w2_mat: (2, 8) BN-scale-folded; shift1/shift2: folded BN shifts.
    Returns logits (N, 2, H, W) f32 and anomaly (N, 1, H, W) f32."""
    N, Cin, H, W = fused_nchw.shape
    HW = H * W
    cmid = w1_mat.shape[0]
    cout = w2_mat.shape[0]
    halo_need = 2 * W + 2          # max tap offset (dy=2, dx=2)

    w1_bf = w1_mat.astype(jnp.bfloat16)
    w2_bf = w2_mat.astype(jnp.bfloat16)
    sh1 = shift1.reshape(cmid, 1).astype(jnp.float32)
    sh2 = shift2.reshape(cout, 1).astype(jnp.float32)

    x_flat = fused_nchw.reshape(N, Cin, HW).astype(jnp.bfloat16)

    # ---- pick the HW tiling: whole image rows per tile, 128-lane aligned ----
    tile_h = 0
    for r in range(1, H + 1):
        if H % r == 0 and (r * W) % 128 == 0 and r * W <= max_tile_lanes:
            tile_h = r
    tile_j = tile_h * W
    halo_blk = 0
    if tile_h > 0:
        hb = 128
        while hb <= tile_j:
            if tile_j % hb == 0 and hb >= halo_need:
                halo_blk = hb
                break
            hb += 128
    tiled = tile_h > 0 and halo_blk > 0

    cparams = pltpu.CompilerParams(
        dimension_semantics=("parallel", "parallel") if tiled else ("parallel",),
        vmem_limit_bytes=vmem_limit_bytes)
    out_shape = (jax.ShapeDtypeStruct((N, cout, HW), jnp.float32),
                 jax.ShapeDtypeStruct((N, 1, HW), jnp.float32))
    pad_lo = W + 1                 # one zero row on top + one extra element

    if tiled:
        n_tiles = HW // tile_j
        M = HW + halo_blk          # halo_blk >= 2W+2, so all tap reads in range
        p = jnp.pad(x_flat, ((0, 0), (0, 0), (pad_lo, M - pad_lo - HW)))
        mask = _boundary_mask(tile_j, W)
        step = tile_j // halo_blk
        kernel = functools.partial(_fuse_kernel_tiled, cin=Cin, w=W,
                                   tile_j=tile_j, halo_blk=halo_blk)
        grid_spec = pltpu.PrefetchScalarGridSpec(
            num_scalar_prefetch=0,
            grid=(N, n_tiles),
            in_specs=[
                pl.BlockSpec((None, Cin, tile_j), lambda b, t: (b, 0, t)),
                pl.BlockSpec((None, Cin, halo_blk),
                             lambda b, t: (b, 0, (t + 1) * step)),
                pl.BlockSpec((cmid, 9 * Cin), lambda b, t: (0, 0)),
                pl.BlockSpec((cmid, 1), lambda b, t: (0, 0)),
                pl.BlockSpec((cout, cmid), lambda b, t: (0, 0)),
                pl.BlockSpec((cout, 1), lambda b, t: (0, 0)),
                pl.BlockSpec((2, tile_j), lambda b, t: (0, 0)),
            ],
            out_specs=[
                pl.BlockSpec((None, cout, tile_j), lambda b, t: (b, 0, t)),
                pl.BlockSpec((None, 1, tile_j), lambda b, t: (b, 0, t)),
            ],
            scratch_shapes=[pltpu.VMEM((Cin, tile_j + halo_blk), jnp.bfloat16)],
        )
        logits, anom = pl.pallas_call(
            kernel, out_shape=out_shape, grid_spec=grid_spec,
            compiler_params=cparams,
        )(p, p, w1_bf, sh1, w2_bf, sh2, mask)
    else:
        # Fallback: one full-image block per batch element (no 128-alignment
        # requirements because every block equals the full array dims).
        M = HW + halo_need
        p = jnp.pad(x_flat, ((0, 0), (0, 0), (pad_lo, M - pad_lo - HW)))
        mask = _boundary_mask(HW, W)
        kernel = functools.partial(_fuse_kernel_full, cin=Cin, w=W, hw=HW)
        grid_spec = pltpu.PrefetchScalarGridSpec(
            num_scalar_prefetch=0,
            grid=(N,),
            in_specs=[
                pl.BlockSpec((None, Cin, M), lambda b: (b, 0, 0)),
                pl.BlockSpec((cmid, 9 * Cin), lambda b: (0, 0)),
                pl.BlockSpec((cmid, 1), lambda b: (0, 0)),
                pl.BlockSpec((cout, cmid), lambda b: (0, 0)),
                pl.BlockSpec((cout, 1), lambda b: (0, 0)),
                pl.BlockSpec((2, HW), lambda b: (0, 0)),
            ],
            out_specs=[
                pl.BlockSpec((None, cout, HW), lambda b: (b, 0, 0)),
                pl.BlockSpec((None, 1, HW), lambda b: (b, 0, 0)),
            ],
        )
        logits, anom = pl.pallas_call(
            kernel, out_shape=out_shape, grid_spec=grid_spec,
            compiler_params=cparams,
        )(p, w1_bf, sh1, w2_bf, sh2, mask)

    # NCHW already has HW last -> pure (free) reshapes, no transpose.
    return logits.reshape(N, cout, H, W), anom.reshape(N, 1, H, W)


# -----------------------------------------------------------------------------
# Plain-JAX glue: frozen-model stand-ins + parameter setup.
# -----------------------------------------------------------------------------
def bilinear_resize_align_corners(x, out_h, out_w):
    """x: (N, C, h, w) -> (N, C, out_h, out_w), F.interpolate(align_corners=True)."""
    n, c, h, w = x.shape
    ys = jnp.zeros((out_h,)) if h == 1 else jnp.linspace(0.0, h - 1.0, out_h)
    xs = jnp.zeros((out_w,)) if w == 1 else jnp.linspace(0.0, w - 1.0, out_w)
    y0 = jnp.floor(ys).astype(jnp.int32)
    x0 = jnp.floor(xs).astype(jnp.int32)
    y1 = jnp.minimum(y0 + 1, h - 1)
    x1 = jnp.minimum(x0 + 1, w - 1)
    wy = (ys - y0.astype(jnp.float32))[:, None]
    wx = (xs - x0.astype(jnp.float32))[None, :]

    def g(yi, xi):
        return x[:, :, yi, :][:, :, :, xi]

    top = g(y0, x0) * (1.0 - wx) + g(y0, x1) * wx
    bot = g(y1, x0) * (1.0 - wx) + g(y1, x1) * wx
    return top * (1.0 - wy) + bot * wy


def conv_nchw(x, w, b, stride=1, padding="SAME"):
    y = lax.conv_general_dilated(
        x, w, (stride, stride), padding,
        dimension_numbers=("NCHW", "OIHW", "NCHW"))
    return y + b[None, :, None, None]


def fold_fuse_params(params, eps=1e-5):
    """Fold conv bias + eval-mode BN into scale-folded weights and shifts."""
    cin = params["f1_w"].shape[1]
    cmid = params["f1_w"].shape[0]
    scale1 = params["bn1_gamma"] / jnp.sqrt(params["bn1_var"] + eps)
    shift1 = (params["f1_b"] - params["bn1_mean"]) * scale1 + params["bn1_beta"]
    # (O, I, kH, kW) -> (O, kH, kW, I) -> (O, 9*I); column order = tap-major.
    w1_mat = jnp.transpose(params["f1_w"], (0, 2, 3, 1)).reshape(cmid, 9 * cin)
    w1_mat = w1_mat * scale1[:, None]

    scale2 = params["bn2_gamma"] / jnp.sqrt(params["bn2_var"] + eps)
    shift2 = (params["f2_b"] - params["bn2_mean"]) * scale2 + params["bn2_beta"]
    w2_mat = params["f2_w"][:, :, 0, 0] * scale2[:, None]
    return w1_mat, shift1, w2_mat, shift2


def make_params(key, num_classes=4, in_ch=3, enc_ch=32, low_ch=16):
    ks = jax.random.split(key, 16)
    p = {}
    # TODO(synk): stand-ins for the frozen DeepLab + ReconstructionDecoder.
    p["enc_w"] = 0.05 * jax.random.normal(ks[0], (enc_ch, in_ch, 3, 3), jnp.float32)
    p["enc_b"] = 0.01 * jax.random.normal(ks[1], (enc_ch,), jnp.float32)
    p["low_w"] = 0.05 * jax.random.normal(ks[2], (low_ch, in_ch, 3, 3), jnp.float32)
    p["low_b"] = 0.01 * jax.random.normal(ks[3], (low_ch,), jnp.float32)
    p["seg_w"] = 0.05 * jax.random.normal(ks[4], (num_classes, enc_ch, 1, 1), jnp.float32)
    p["seg_b"] = 0.01 * jax.random.normal(ks[5], (num_classes,), jnp.float32)
    p["rec_w"] = 0.05 * jax.random.normal(ks[6], (in_ch, in_ch, 1, 1), jnp.float32)
    p["rec_b"] = 0.01 * jax.random.normal(ks[7], (in_ch,), jnp.float32)

    # fuse_conv parameters (correspond exactly to the nn.Sequential).
    cin = num_classes + 1
    p["f1_w"] = 0.1 * jax.random.normal(ks[8], (8, cin, 3, 3), jnp.float32)
    p["f1_b"] = 0.01 * jax.random.normal(ks[9], (8,), jnp.float32)
    p["bn1_gamma"] = 1.0 + 0.1 * jax.random.normal(ks[10], (8,), jnp.float32)
    p["bn1_beta"] = 0.1 * jax.random.normal(ks[11], (8,), jnp.float32)
    p["bn1_mean"] = 0.05 * jax.random.normal(ks[12], (8,), jnp.float32)
    p["bn1_var"] = 0.5 + jnp.abs(0.2 * jax.random.normal(ks[13], (8,), jnp.float32))
    p["f2_w"] = 0.1 * jax.random.normal(ks[14], (2, 8, 1, 1), jnp.float32)
    p["f2_b"] = 0.01 * jax.random.normal(ks[15], (2,), jnp.float32)
    p["bn2_gamma"] = jnp.array([1.05, 0.95], jnp.float32)
    p["bn2_beta"] = jnp.array([0.02, -0.03], jnp.float32)
    p["bn2_mean"] = jnp.array([0.01, -0.01], jnp.float32)
    p["bn2_var"] = jnp.array([0.8, 1.2], jnp.float32)
    return p


def deeplab_recon_fuse_forward(params, x):
    """x: (N, 3, H, W) float32.  Mirrors DeepLabReconFuseSimpleTrain.forward."""
    N, C, H, W = x.shape

    # ---- frozen deeplab stand-in (plain JAX) ----
    encoder_feat = conv_nchw(x, params["enc_w"], params["enc_b"], stride=4)
    low_level_feat = conv_nchw(x, params["low_w"], params["low_b"], stride=2)
    del low_level_feat
    seg_small = conv_nchw(encoder_feat, params["seg_w"], params["seg_b"])
    segmentation = bilinear_resize_align_corners(seg_small, H, W)

    # ---- reconstruction decoder stand-in ----
    recon = conv_nchw(x, params["rec_w"], params["rec_b"])
    recon_loss = jnp.mean(jnp.abs(recon - x), axis=1, keepdims=True)
    bl = encoder_feat

    # ---- trainable fuse head: the Pallas hot path ----
    fused_in = jnp.concatenate([segmentation, recon_loss], axis=1)
    w1_mat, shift1, w2_mat, shift2 = fold_fuse_params(params)
    logits, anomaly = fuse_forward_pallas(fused_in, w1_mat, shift1, w2_mat, shift2)

    return {
        "input": x,
        "segmentation": segmentation,
        "binary_segmentation": logits,
        "recon_img": recon,
        "recon_loss": recon_loss,
        "recon_bottleneck": bl,
        "anomaly_score": anomaly,
    }


# -----------------------------------------------------------------------------
# Numpy reference for the fuse path (mirrors the kernel's bf16 quantization).
# -----------------------------------------------------------------------------
def _bf16_round_np(x):
    return np.asarray(jnp.asarray(np.asarray(x), jnp.float32)
                      .astype(jnp.bfloat16).astype(jnp.float32))


def fuse_reference_np(fused, w1_mat, shift1, w2_mat, shift2):
    fused_b = _bf16_round_np(fused)
    w1_b = _bf16_round_np(w1_mat)
    w2_b = _bf16_round_np(w2_mat)
    N, Cin, H, W = fused.shape
    cmid, cout = w1_mat.shape[0], w2_mat.shape[0]

    xp = np.zeros((N, Cin, H + 2, W + 2), np.float32)
    xp[:, :, 1:H + 1, 1:W + 1] = fused_b
    hid = np.zeros((N, cmid, H, W), np.float32)
    for k in range(9):
        dy, dx = divmod(k, 3)
        wk = w1_b[:, k * Cin:(k + 1) * Cin]
        slab = xp[:, :, dy:dy + H, dx:dx + W]
        hid = hid + np.einsum("oc,nchw->nohw", wk, slab).astype(np.float32)
    hid = np.maximum(hid + np.asarray(shift1).reshape(1, cmid, 1, 1), 0.0)
    hid = _bf16_round_np(hid)
    y = np.einsum("oc,nchw->nohw", w2_b, hid).astype(np.float32)
    y = np.maximum(y + np.asarray(shift2).reshape(1, cout, 1, 1), 0.0)
    anom = 1.0 / (1.0 + np.exp(y[:, 1:2] - y[:, 0:1]))
    return y.astype(np.float32), anom.astype(np.float32)


if __name__ == "__main__":
    key = jax.random.PRNGKey(0)
    pkey, xkey, fkey1, fkey2 = jax.random.split(key, 4)

    N, C, H, W = 2, 3, 16, 16
    num_classes = 4

    params = make_params(pkey, num_classes=num_classes, in_ch=C)
    x = jax.random.normal(xkey, (N, C, H, W), jnp.float32)

    fwd = jax.jit(deeplab_recon_fuse_forward)
    out = fwd(params, x)
    jax.block_until_ready(out)

    folded = fold_fuse_params(params)
    w1_np, sh1_np, w2_np, sh2_np = [np.asarray(a) for a in folded]

    RTOL, ATOL = 1e-2, 1e-3

    # --- check 1: fuse path inside the full forward (tiled path) ---
    fused_in = np.asarray(jnp.concatenate(
        [out["segmentation"], out["recon_loss"]], axis=1))
    ref_logits, ref_anom = fuse_reference_np(fused_in, w1_np, sh1_np, w2_np, sh2_np)
    np.testing.assert_allclose(np.asarray(out["binary_segmentation"]),
                               ref_logits, rtol=RTOL, atol=ATOL)
    np.testing.assert_allclose(np.asarray(out["anomaly_score"]),
                               ref_anom, rtol=RTOL, atol=ATOL)

    # --- check 2: multi-tile path (2 HW tiles per image, halo straddle) ---
    fused_a = jax.random.normal(fkey1, (2, num_classes + 1, 16, 16), jnp.float32)
    fuse_small = jax.jit(functools.partial(fuse_forward_pallas, max_tile_lanes=128))
    lg_a, an_a = fuse_small(fused_a, *folded)
    jax.block_until_ready((lg_a, an_a))
    ref_lg_a, ref_an_a = fuse_reference_np(np.asarray(fused_a),
                                           w1_np, sh1_np, w2_np, sh2_np)
    np.testing.assert_allclose(np.asarray(lg_a), ref_lg_a, rtol=RTOL, atol=ATOL)
    np.testing.assert_allclose(np.asarray(an_a), ref_an_a, rtol=RTOL, atol=ATOL)

    # --- check 3: fallback full-image-block path (HW not 128-tileable) ---
    fused_b = jax.random.normal(fkey2, (1, num_classes + 1, 12, 12), jnp.float32)
    lg_b, an_b = jax.jit(fuse_forward_pallas)(fused_b, *folded)
    jax.block_until_ready((lg_b, an_b))
    ref_lg_b, ref_an_b = fuse_reference_np(np.asarray(fused_b),
                                           w1_np, sh1_np, w2_np, sh2_np)
    np.testing.assert_allclose(np.asarray(lg_b), ref_lg_b, rtol=RTOL, atol=ATOL)
    np.testing.assert_allclose(np.asarray(an_b), ref_an_b, rtol=RTOL, atol=ATOL)

    assert out["binary_segmentation"].shape == (N, 2, H, W)
    assert out["anomaly_score"].shape == (N, 1, H, W)
    assert out["segmentation"].shape == (N, num_classes, H, W)
    assert out["recon_loss"].shape == (N, 1, H, W)
    assert out["recon_img"].shape == (N, C, H, W)

    print("KERNEL_OK")
</pallas_src>

<mosaic_0001>
module attributes {stable_mosaic.version = 11 : i64} {
  func.func @_fuse_kernel_tiled(%arg0: i32, %arg1: i32, %arg2: memref<1x5x256xbf16, #tpu.memory_space<vmem>>, %arg3: memref<1x5x128xbf16, #tpu.memory_space<vmem>>, %arg4: memref<8x45xbf16, #tpu.memory_space<vmem>>, %arg5: memref<8x1xf32, #tpu.memory_space<vmem>>, %arg6: memref<2x8xbf16, #tpu.memory_space<vmem>>, %arg7: memref<2x1xf32, #tpu.memory_space<vmem>>, %arg8: memref<2x256xbf16, #tpu.memory_space<vmem>>, %arg9: memref<1x2x256xf32, #tpu.memory_space<vmem>>, %arg10: memref<1x1x256xf32, #tpu.memory_space<vmem>>, %arg11: memref<5x384xbf16, #tpu.memory_space<vmem>>) attributes {dimension_semantics = [#tpu.dimension_semantics<parallel>, #tpu.dimension_semantics<parallel>], iteration_bounds = array<i64: 2, 1>, scalar_prefetch = 0 : i64, scratch_operands = 1 : i64, tpu.core_type = #tpu.core_type<tc>, window_params = [{transform_indices = @transform_0, window_bounds = array<i64: 1, 5, 256>}, {transform_indices = @transform_1, window_bounds = array<i64: 1, 5, 128>}, {pipeline_mode = #tpu.pipeline_mode<synchronous>, transform_indices = @transform_2, window_bounds = array<i64: 8, 45>}, {pipeline_mode = #tpu.pipeline_mode<synchronous>, transform_indices = @transform_3, window_bounds = array<i64: 8, 1>}, {pipeline_mode = #tpu.pipeline_mode<synchronous>, transform_indices = @transform_4, window_bounds = array<i64: 2, 8>}, {pipeline_mode = #tpu.pipeline_mode<synchronous>, transform_indices = @transform_5, window_bounds = array<i64: 2, 1>}, {pipeline_mode = #tpu.pipeline_mode<synchronous>, transform_indices = @transform_6, window_bounds = array<i64: 2, 256>}, {transform_indices = @transform_7, window_bounds = array<i64: 1, 2, 256>}, {transform_indices = @transform_8, window_bounds = array<i64: 1, 1, 256>}]} {
    %c0 = arith.constant 0 : index
    %c0_0 = arith.constant 0 : index
    %c0_1 = arith.constant 0 : index
    %0 = vector.load %arg2[%c0, %c0_0, %c0_1] : memref<1x5x256xbf16, #tpu.memory_space<vmem>>, vector<1x5x256xbf16>
    %1 = vector.shape_cast %0 : vector<1x5x256xbf16> to vector<5x256xbf16>
    %c0_2 = arith.constant 0 : index
    %c0_3 = arith.constant 0 : index
    %2 = vector.load %arg11[%c0_2, %c0_3] : memref<5x384xbf16, #tpu.memory_space<vmem>>, vector<5x256xbf16>
    tpu.vector_store %arg11[%c0_2, %c0_3], %1 {strides = array<i32>} : memref<5x384xbf16, #tpu.memory_space<vmem>>, vector<5x256xbf16>,
    %c0_4 = arith.constant 0 : index
    %c0_5 = arith.constant 0 : index
    %c0_6 = arith.constant 0 : index
    %3 = vector.load %arg3[%c0_4, %c0_5, %c0_6] : memref<1x5x128xbf16, #tpu.memory_space<vmem>>, vector<1x5x128xbf16>
    %4 = vector.shape_cast %3 : vector<1x5x128xbf16> to vector<5x128xbf16>
    %c0_7 = arith.constant 0 : index
    %c256 = arith.constant 256 : index
    %5 = vector.load %arg11[%c0_7, %c256] : memref<5x384xbf16, #tpu.memory_space<vmem>>, vector<5x128xbf16>
    tpu.vector_store %arg11[%c0_7, %c256], %4 {strides = array<i32>} : memref<5x384xbf16, #tpu.memory_space<vmem>>, vector<5x128xbf16>,
    %c0_8 = arith.constant 0 : index
    %c0_9 = arith.constant 0 : index
    %6 = vector.load %arg8[%c0_8, %c0_9] : memref<2x256xbf16, #tpu.memory_space<vmem>>, vector<1x256xbf16>
    %c1 = arith.constant 1 : index
    %c0_10 = arith.constant 0 : index
    %7 = vector.load %arg8[%c1, %c0_10] : memref<2x256xbf16, #tpu.memory_space<vmem>>, vector<1x256xbf16>
    %c0_11 = arith.constant 0 : index
    %c0_12 = arith.constant 0 : index
    %8 = vector.load %arg11[%c0_11, %c0_12] : memref<5x384xbf16, #tpu.memory_space<vmem>>, vector<5x256xbf16>
    %9 = vector.broadcast %6 : vector<1x256xbf16> to vector<5x256xbf16>
    %10 = arith.mulf %8, %9 : vector<5x256xbf16>
    %c0_13 = arith.constant 0 : index
    %c0_14 = arith.constant 0 : index
    %11 = vector.load %arg4[%c0_13, %c0_14] : memref<8x45xbf16, #tpu.memory_space<vmem>>, vector<8x5xbf16>
    %cst = arith.constant dense<0.000000e+00> : vector<8x256xf32>
    %12 = tpu.matmul %11, %10, %cst {dimension_numbers = #tpu.dot_dimension_numbers<[1], [0], [0], [1], [0, 0, 1, 1], [], []>} : vector<8x5xbf16>, vector<5x256xbf16>, vector<8x256xf32> -> vector<8x256xf32>
    %c0_15 = arith.constant 0 : index
    %c1_16 = arith.constant 1 : index
    %13 = vector.load %arg11[%c0_15, %c1_16] : memref<5x384xbf16, #tpu.memory_space<vmem>>, vector<5x256xbf16>
    %c0_17 = arith.constant 0 : index
    %c5 = arith.constant 5 : index
    %14 = vector.load %arg4[%c0_17, %c5] : memref<8x45xbf16, #tpu.memory_space<vmem>>, vector<8x5xbf16>
    %cst_18 = arith.constant dense<0.000000e+00> : vector<8x256xf32>
    %15 = tpu.matmul %14, %13, %cst_18 {dimension_numbers = #tpu.dot_dimension_numbers<[1], [0], [0], [1], [0, 0, 1, 1], [], []>} : vector<8x5xbf16>, vector<5x256xbf16>, vector<8x256xf32> -> vector<8x256xf32>
    %16 = arith.addf %12, %15 : vector<8x256xf32>
    %c0_19 = arith.constant 0 : index
    %c2 = arith.constant 2 : index
    %17 = vector.load %arg11[%c0_19, %c2] : memref<5x384xbf16, #tpu.memory_space<vmem>>, vector<5x256xbf16>
    %18 = vector.broadcast %7 : vector<1x256xbf16> to vector<5x256xbf16>
    %19 = arith.mulf %17, %18 : vector<5x256xbf16>
    %c0_20 = arith.constant 0 : index
    %c10 = arith.constant 10 : index
    %20 = vector.load %arg4[%c0_20, %c10] : memref<8x45xbf16, #tpu.memory_space<vmem>>, vector<8x5xbf16>
    %cst_21 = arith.constant dense<0.000000e+00> : vector<8x256xf32>
    %21 = tpu.matmul %20, %19, %cst_21 {dimension_numbers = #tpu.dot_dimension_numbers<[1], [0], [0], [1], [0, 0, 1, 1], [], []>} : vector<8x5xbf16>, vector<5x256xbf16>, vector<8x256xf32> -> vector<8x256xf32>
    %22 = arith.addf %16, %21 : vector<8x256xf32>
    %c0_22 = arith.constant 0 : index
    %c16 = arith.constant 16 : index
    %23 = vector.load %arg11[%c0_22, %c16] : memref<5x384xbf16, #tpu.memory_space<vmem>>, vector<5x256xbf16>
    %24 = vector.broadcast %6 : vector<1x256xbf16> to vector<5x256xbf16>
    %25 = arith.mulf %23, %24 : vector<5x256xbf16>
    %c0_23 = arith.constant 0 : index
    %c15 = arith.constant 15 : index
    %26 = vector.load %arg4[%c0_23, %c15] : memref<8x45xbf16, #tpu.memory_space<vmem>>, vector<8x5xbf16>
    %cst_24 = arith.constant dense<0.000000e+00> : vector<8x256xf32>
    %27 = tpu.matmul %26, %25, %cst_24 {dimension_numbers = #tpu.dot_dimension_numbers<[1], [0], [0], [1], [0, 0, 1, 1], [], []>} : vector<8x5xbf16>, vector<5x256xbf16>, vector<8x256xf32> -> vector<8x256xf32>
    %28 = arith.addf %22, %27 : vector<8x256xf32>
    %c0_25 = arith.constant 0 : index
    %c17 = arith.constant 17 : index
    %29 = vector.load %arg11[%c0_25, %c17] : memref<5x384xbf16, #tpu.memory_space<vmem>>, vector<5x256xbf16>
    %c0_26 = arith.constant 0 : index
    %c20 = arith.constant 20 : index
    %30 = vector.load %arg4[%c0_26, %c20] : memref<8x45xbf16, #tpu.memory_space<vmem>>, vector<8x5xbf16>
    %cst_27 = arith.constant dense<0.000000e+00> : vector<8x256xf32>
    %31 = tpu.matmul %30, %29, %cst_27 {dimension_numbers = #tpu.dot_dimension_numbers<[1], [0], [0], [1], [0, 0, 1, 1], [], []>} : vector<8x5xbf16>, vector<5x256xbf16>, vector<8x256xf32> -> vector<8x256xf32>
    %32 = arith.addf %28, %31 : vector<8x256xf32>
    %c0_28 = arith.constant 0 : index
    %c18 = arith.constant 18 : index
    %33 = vector.load %arg11[%c0_28, %c18] : memref<5x384xbf16, #tpu.memory_space<vmem>>, vector<5x256xbf16>
    %34 = vector.broadcast %7 : vector<1x256xbf16> to vector<5x256xbf16>
    %35 = arith.mulf %33, %34 : vector<5x256xbf16>
    %c0_29 = arith.constant 0 : index
    %c25 = arith.constant 25 : index
    %36 = vector.load %arg4[%c0_29, %c25] : memref<8x45xbf16, #tpu.memory_space<vmem>>, vector<8x5xbf16>
    %cst_30 = arith.constant dense<0.000000e+00> : vector<8x256xf32>
    %37 = tpu.matmul %36, %35, %cst_30 {dimension_numbers = #tpu.dot_dimension_numbers<[1], [0], [0], [1], [0, 0, 1, 1], [], []>} : vector<8x5xbf16>, vector<5x256xbf16>, vector<8x256xf32> -> vector<8x256xf32>
    %38 = arith.addf %32, %37 : vector<8x256xf32>
    %c0_31 = arith.constant 0 : index
    %c32 = arith.constant 32 : index
    %39 = vector.load %arg11[%c0_31, %c32] : memref<5x384xbf16, #tpu.memory_space<vmem>>, vector<5x256xbf16>
    %40 = vector.broadcast %6 : vector<1x256xbf16> to vector<5x256xbf16>
    %41 = arith.mulf %39, %40 : vector<5x256xbf16>
    %c0_32 = arith.constant 0 : index
    %c30 = arith.constant 30 : index
    %42 = vector.load %arg4[%c0_32, %c30] : memref<8x45xbf16, #tpu.memory_space<vmem>>, vector<8x5xbf16>
    %cst_33 = arith.constant dense<0.000000e+00> : vector<8x256xf32>
    %43 = tpu.matmul %42, %41, %cst_33 {dimension_numbers = #tpu.dot_dimension_numbers<[1], [0], [0], [1], [0, 0, 1, 1], [], []>} : vector<8x5xbf16>, vector<5x256xbf16>, vector<8x256xf32> -> vector<8x256xf32>
    %44 = arith.addf %38, %43 : vector<8x256xf32>
    %c0_34 = arith.constant 0 : index
    %c33 = arith.constant 33 : index
    %45 = vector.load %arg11[%c0_34, %c33] : memref<5x384xbf16, #tpu.memory_space<vmem>>, vector<5x256xbf16>
    %c0_35 = arith.constant 0 : index
    %c35 = arith.constant 35 : index
    %46 = vector.load %arg4[%c0_35, %c35] : memref<8x45xbf16, #tpu.memory_space<vmem>>, vector<8x5xbf16>
    %cst_36 = arith.constant dense<0.000000e+00> : vector<8x256xf32>
    %47 = tpu.matmul %46, %45, %cst_36 {dimension_numbers = #tpu.dot_dimension_numbers<[1], [0], [0], [1], [0, 0, 1, 1], [], []>} : vector<8x5xbf16>, vector<5x256xbf16>, vector<8x256xf32> -> vector<8x256xf32>
    %48 = arith.addf %44, %47 : vector<8x256xf32>
    %c0_37 = arith.constant 0 : index
    %c34 = arith.constant 34 : index
    %49 = vector.load %arg11[%c0_37, %c34] : memref<5x384xbf16, #tpu.memory_space<vmem>>, vector<5x256xbf16>
    %50 = vector.broadcast %7 : vector<1x256xbf16> to vector<5x256xbf16>
    %51 = arith.mulf %49, %50 : vector<5x256xbf16>
    %c0_38 = arith.constant 0 : index
    %c40 = arith.constant 40 : index
    %52 = vector.load %arg4[%c0_38, %c40] : memref<8x45xbf16, #tpu.memory_space<vmem>>, vector<8x5xbf16>
    %cst_39 = arith.constant dense<0.000000e+00> : vector<8x256xf32>
    %53 = tpu.matmul %52, %51, %cst_39 {dimension_numbers = #tpu.dot_dimension_numbers<[1], [0], [0], [1], [0, 0, 1, 1], [], []>} : vector<8x5xbf16>, vector<5x256xbf16>, vector<8x256xf32> -> vector<8x256xf32>
    %54 = arith.addf %48, %53 : vector<8x256xf32>
    %c0_40 = arith.constant 0 : index
    %c0_41 = arith.constant 0 : index
    %55 = vector.load %arg5[%c0_40, %c0_41] : memref<8x1xf32, #tpu.memory_space<vmem>>, vector<8x1xf32>
    %56 = vector.broadcast %55 : vector<8x1xf32> to vector<8x256xf32>
    %57 = arith.addf %54, %56 : vector<8x256xf32>
    %cst_42 = arith.constant 0.000000e+00 : f32
    %58 = vector.broadcast %cst_42 : f32 to vector<8x256xf32>
    %59 = arith.maximumf %57, %58 : vector<8x256xf32>
    %c0_43 = arith.constant 0 : index
    %c0_44 = arith.constant 0 : index
    %60 = vector.load %arg6[%c0_43, %c0_44] : memref<2x8xbf16, #tpu.memory_space<vmem>>, vector<2x8xbf16>
    %61 = arith.truncf %59 : vector<8x256xf32> to vector<8x256xbf16>
    %cst_45 = arith.constant dense<0.000000e+00> : vector<2x256xf32>
    %62 = tpu.matmul %60, %61, %cst_45 {dimension_numbers = #tpu.dot_dimension_numbers<[1], [0], [0], [1], [0, 0, 1, 1], [], []>} : vector<2x8xbf16>, vector<8x256xbf16>, vector<2x256xf32> -> vector<2x256xf32>
    %c0_46 = arith.constant 0 : index
    %c0_47 = arith.constant 0 : index
    %63 = vector.load %arg7[%c0_46, %c0_47] : memref<2x1xf32, #tpu.memory_space<vmem>>, vector<2x1xf32>
    %64 = vector.broadcast %63 : vector<2x1xf32> to vector<2x256xf32>
    %65 = arith.addf %62, %64 : vector<2x256xf32>
    %cst_48 = arith.constant 0.000000e+00 : f32
    %66 = vector.broadcast %cst_48 : f32 to vector<2x256xf32>
    %67 = arith.maximumf %65, %66 : vector<2x256xf32>
    %68 = vector.extract_strided_slice %67 {offsets = [1, 0], sizes = [1, 256], strides = [1, 1]} : vector<2x256xf32> to vector<1x256xf32>
    %69 = vector.extract_strided_slice %67 {offsets = [0, 0], sizes = [1, 256], strides = [1, 1]} : vector<2x256xf32> to vector<1x256xf32>
    %70 = arith.subf %68, %69 : vector<1x256xf32>
    %71 = math.exp %70 : vector<1x256xf32>
    %cst_49 = arith.constant 1.000000e+00 : f32
    %72 = vector.broadcast %cst_49 : f32 to vector<1x256xf32>
    %73 = arith.addf %72, %71 : vector<1x256xf32>
    %74 = tpu.reciprocal %73 : vector<1x256xf32> -> vector<1x256xf32>
    %c0_50 = arith.constant 0 : index
    %c0_51 = arith.constant 0 : index
    %c0_52 = arith.constant 0 : index
    %75 = vector.load %arg9[%c0_50, %c0_51, %c0_52] : memref<1x2x256xf32, #tpu.memory_space<vmem>>, vector<1x2x256xf32>
    %76 = vector.shape_cast %75 : vector<1x2x256xf32> to vector<2x256xf32>
    %77 = vector.shape_cast %67 : vector<2x256xf32> to vector<1x2x256xf32>
    tpu.vector_store %arg9[%c0_50, %c0_51, %c0_52], %77 {strides = array<i32>} : memref<1x2x256xf32, #tpu.memory_space<vmem>>, vector<1x2x256xf32>,
    %c0_53 = arith.constant 0 : index
    %c0_54 = arith.constant 0 : index
    %c0_55 = arith.constant 0 : index
    %78 = vector.load %arg10[%c0_53, %c0_54, %c0_55] : memref<1x1x256xf32, #tpu.memory_space<vmem>>, vector<1x1x256xf32>
    %79 = vector.shape_cast %78 : vector<1x1x256xf32> to vector<1x256xf32>
    %80 = vector.shape_cast %74 : vector<1x256xf32> to vector<1x1x256xf32>
    tpu.vector_store %arg10[%c0_53, %c0_54, %c0_55], %80 {strides = array<i32>} : memref<1x1x256xf32, #tpu.memory_space<vmem>>, vector<1x1x256xf32>,
    return
  }
  func.func @transform_0(%arg0: i32, %arg1: i32) -> (i32, i32, i32) {
    %c0_i32 = arith.constant 0 : i32
    %c0_i32_0 = arith.constant 0 : i32
    return %arg0, %c0_i32, %arg1 : i32, i32, i32
  }
  func.func @transform_1(%arg0: i32, %arg1: i32) -> (i32, i32, i32) {
    %c1_i32 = arith.constant 1 : i32
    %0 = arith.addi %arg1, %c1_i32 : i32
    %c2_i32 = arith.constant 2 : i32
    %1 = arith.muli %0, %c2_i32 : i32
    %c0_i32 = arith.constant 0 : i32
    %c0_i32_0 = arith.constant 0 : i32
    return %arg0, %c0_i32, %1 : i32, i32, i32
  }
  func.func @transform_2(%arg0: i32, %arg1: i32) -> (i32, i32) {
    %c0_i32 = arith.constant 0 : i32
    %c0_i32_0 = arith.constant 0 : i32
    %c0_i32_1 = arith.constant 0 : i32
    return %c0_i32, %c0_i32_0 : i32, i32
  }
  func.func @transform_3(%arg0: i32, %arg1: i32) -> (i32, i32) {
    %c0_i32 = arith.constant 0 : i32
    %c0_i32_0 = arith.constant 0 : i32
    %c0_i32_1 = arith.constant 0 : i32
    return %c0_i32, %c0_i32_0 : i32, i32
  }
  func.func @transform_4(%arg0: i32, %arg1: i32) -> (i32, i32) {
    %c0_i32 = arith.constant 0 : i32
    %c0_i32_0 = arith.constant 0 : i32
    %c0_i32_1 = arith.constant 0 : i32
    return %c0_i32, %c0_i32_0 : i32, i32
  }
  func.func @transform_5(%arg0: i32, %arg1: i32) -> (i32, i32) {
    %c0_i32 = arith.constant 0 : i32
    %c0_i32_0 = arith.constant 0 : i32
    %c0_i32_1 = arith.constant 0 : i32
    return %c0_i32, %c0_i32_0 : i32, i32
  }
  func.func @transform_6(%arg0: i32, %arg1: i32) -> (i32, i32) {
    %c0_i32 = arith.constant 0 : i32
    %c0_i32_0 = arith.constant 0 : i32
    %c0_i32_1 = arith.constant 0 : i32
    return %c0_i32, %c0_i32_0 : i32, i32
  }
  func.func @transform_7(%arg0: i32, %arg1: i32) -> (i32, i32, i32) {
    %c0_i32 = arith.constant 0 : i32
    %c0_i32_0 = arith.constant 0 : i32
    return %arg0, %c0_i32, %arg1 : i32, i32, i32
  }
  func.func @transform_8(%arg0: i32, %arg1: i32) -> (i32, i32, i32) {
    %c0_i32 = arith.constant 0 : i32
    %c0_i32_0 = arith.constant 0 : i32
    return %arg0, %c0_i32, %arg1 : i32, i32, i32
  }
}

</mosaic_0001>

<llo_original>
// kernel: deeplab_recon_fuse_forward.1
$region0: #{deeplab_recon_fuse_forward.1}
  #allocation0 [shape = 'u32[]', space=smem, size = 0x4, offset = 0x4, fixed_abs, tag = 'smem constant byte address 0x4 - core index']
  #allocation1 [shape = 'u32[144,128]{1,0:T(1,128)}', space=vmem, size = 0x12000, scoped, tag = 'internal scratch']
  #allocation2 [shape = 'bf16[5,384]{1,0:T(8,128)(2,1)}', space=vmem, size = 0x1800, scoped, tag = 'scratch operand']
  %s0 = inlined_call_operand.vmem [shape: bf16[2,5,384], index: 0, kind: input, shape index: {}, may-alias: {0,1}]
  %s1 = inlined_call_operand.vmem [shape: bf16[2,5,384], index: 1, kind: input, shape index: {}, may-alias: {0,1}]
  %s2 = inlined_call_operand.vmem [shape: bf16[8,45], index: 2, kind: input, shape index: {}]
  %s3 = inlined_call_operand.vmem [shape: f32[8,1], index: 3, kind: input, shape index: {}]
  %s4 = inlined_call_operand.vmem [shape: bf16[2,8], index: 4, kind: input, shape index: {}]
  %s5 = inlined_call_operand.vmem [shape: f32[2,1], index: 5, kind: input, shape index: {}]
  %s6 = inlined_call_operand.vmem [shape: bf16[2,256], index: 6, kind: input, shape index: {}]
  %s7 = inlined_call_operand.vmem [shape: f32[2,2,256], index: 7, kind: output, shape index: {0}]
  %s8 = inlined_call_operand.vmem [shape: f32[2,1,256], index: 8, kind: output, shape index: {1}]
  %9 = xla_tuple %s7, %s8
  %s10 = sld [smem:[#allocation0]]
  $region69: #{deeplab_recon_fuse_forward.1} parent=0
    _
  %s12 = ssub.s32 1, %s10
  %s13 = scalar_select 0, %s12, %s10
  loop: start=0, step=1, limit=4
  $region2: #{deeplab_recon_fuse_forward.1} parent=0 // loop_pre_header
    _
  $region3: #{deeplab_recon_fuse_forward.1} parent=0 // loop_header
    %s15 = sphi 0, %s19
    %p16 = scmp.ge.s32.totalorder %s15, 4
    %s22 = sphi 0, %s34
    %s23 = sphi 0, %s30
    %s24 = sphi 0, %s22
    %s25 = sphi 0, %s23
    %s26 = sphi 0, %s24
    %s27 = sphi 0, %s25
    %s39 = sphi 0, %s41
    %s42 = sphi 0, %s39
    %s43 = sphi 0, %s42
    %s59 = sphi 0, %s43
    %s71 = sphi 0, %s73
    %s74 = sphi 0, %s71
    %s75 = sphi 0, %s74
    %s91 = sphi 0, %s75
    %s95 = sphi 0, %s95
    %s97 = sphi 0, %s95
    %s98 = sphi 0, %s97
    %s112 = sphi 0, %s98
    %s116 = sphi 0, %s116
    %s118 = sphi 0, %s116
    %s119 = sphi 0, %s118
    %s133 = sphi 0, %s119
    %s137 = sphi 0, %s137
    %s139 = sphi 0, %s137
    %s140 = sphi 0, %s139
    %s154 = sphi 0, %s140
    %s158 = sphi 0, %s158
    %s160 = sphi 0, %s158
    %s161 = sphi 0, %s160
    %s175 = sphi 0, %s161
    %s179 = sphi 0, %s179
    %s181 = sphi 0, %s179
    %s182 = sphi 0, %s181
    %s196 = sphi 0, %s182
    %s204 = sphi 0, %s206
    %s207 = sphi 0, %s204
    %s208 = sphi 0, %s207
    %s224 = sphi 0, %s208
    %s232 = sphi 0, %s234
    %s235 = sphi 0, %s232
    %s236 = sphi 0, %s235
    %s252 = sphi 0, %s236
  $region4: #{deeplab_recon_fuse_forward.1} parent=0 // loop_header_branch
    %18 = sbr.rel (%p16) target = $region8
  $region5: #{deeplab_recon_fuse_forward.1} parent=0 // loop_body
    %s20 = ssub.s32 %s15, 1
    %s21 = ssub.s32 %s15, 2
    %s28 = sadd.s32 1, %s23
    %p29 = scmp.ge.s32.totalorder %s28, 1
    %s30 = scalar_select %p29, 0, %s28
    %s31 = sadd.s32 1, %s22
    %s32 = scalar_select %p29, %s31, %s22
    %p33 = scmp.ge.s32.totalorder %s32, 2
    %s34 = scalar_select %p33, 0, %s32
    %s35 = ssub.s32 %s22, %s34
    %s36 = ssub.s32 %s23, %s30
    %s37 = sor.u32 %s35, %s36
    %p38 = scmp.eq.s32.totalorder %s37, 0
    %s40 = sadd.s32 %s39, 1
    %s41 = scalar_select %p38, %s39, %s40
    %p44 = pneg %p38
    %p45 = scmp.eq.s32.totalorder %s15, 1
    %p46 = por %p44, %p45
    %p47 = scmp.ne.s32.totalorder %s39, %s42
    %p48 = scmp.eq.s32.totalorder %s15, 0
    %p49 = por %p47, %p48
    %p50 = scmp.ne.s32.totalorder %s39, %s42
    %p51 = scmp.eq.s32.totalorder %s20, 1
    %p52 = por %p50, %p51
    %p53 = scmp.ne.s32.totalorder %s42, %s43
    %p54 = scmp.eq.s32.totalorder %s20, 0
    %p55 = por %p53, %p54
    %p56 = scmp.ne.s32.totalorder %s42, %s43
    %p57 = scmp.eq.s32.totalorder %s21, 1
    %p58 = por %p56, %p57
    %p60 = scmp.ne.s32.totalorder %s43, %s59
    %p61 = scmp.eq.s32.totalorder %s21, 0
    %p62 = por %p60, %p61
    %s63 = sadd.s32 %s23, 1
    %s64 = smul.u32 %s63, 2
    %s65 = sadd.s32 %s30, 1
    %s66 = smul.u32 %s65, 2
    %s67 = ssub.s32 %s22, %s34
    %s68 = ssub.s32 %s64, %s66
    %s69 = sor.u32 %s67, %s68
    %p70 = scmp.eq.s32.totalorder %s69, 0
    %s72 = sadd.s32 %s71, 1
    %s73 = scalar_select %p70, %s71, %s72
    %p76 = pneg %p70
    %p77 = scmp.eq.s32.totalorder %s15, 1
    %p78 = por %p76, %p77
    %p79 = scmp.ne.s32.totalorder %s71, %s74
    %p80 = scmp.eq.s32.totalorder %s15, 0
    %p81 = por %p79, %p80
    %p82 = scmp.ne.s32.totalorder %s71, %s74
    %p83 = scmp.eq.s32.totalorder %s20, 1
    %p84 = por %p82, %p83
    %p85 = scmp.ne.s32.totalorder %s74, %s75
    %p86 = scmp.eq.s32.totalorder %s20, 0
    %p87 = por %p85, %p86
    %p88 = scmp.ne.s32.totalorder %s74, %s75
    %p89 = scmp.eq.s32.totalorder %s21, 1
    %p90 = por %p88, %p89
    %p92 = scmp.ne.s32.totalorder %s75, %s91
    %p93 = scmp.eq.s32.totalorder %s21, 0
    %p94 = por %p92, %p93
    %s96 = sadd.s32 %s95, 1
    %p99 = scmp.eq.s32.totalorder %s15, 1
    %p100 = scmp.ne.s32.totalorder %s95, %s97
    %p101 = scmp.eq.s32.totalorder %s15, 0
    %p102 = por %p100, %p101
    %p103 = scmp.ne.s32.totalorder %s95, %s97
    %p104 = scmp.eq.s32.totalorder %s20, 1
    %p105 = por %p103, %p104
    %p106 = scmp.ne.s32.totalorder %s97, %s98
    %p107 = scmp.eq.s32.totalorder %s20, 0
    %p108 = por %p106, %p107
    %p109 = scmp.ne.s32.totalorder %s97, %s98
    %p110 = scmp.eq.s32.totalorder %s21, 1
    %p111 = por %p109, %p110
    %p113 = scmp.ne.s32.totalorder %s98, %s112
    %p114 = scmp.eq.s32.totalorder %s21, 0
    %p115 = por %p113, %p114
    %s117 = sadd.s32 %s116, 1
    %p120 = scmp.eq.s32.totalorder %s15, 1
    %p121 = scmp.ne.s32.totalorder %s116, %s118
    %p122 = scmp.eq.s32.totalorder %s15, 0
    %p123 = por %p121, %p122
    %p124 = scmp.ne.s32.totalorder %s116, %s118
    %p125 = scmp.eq.s32.totalorder %s20, 1
    %p126 = por %p124, %p125
    %p127 = scmp.ne.s32.totalorder %s118, %s119
    %p128 = scmp.eq.s32.totalorder %s20, 0
    %p129 = por %p127, %p128
    %p130 = scmp.ne.s32.totalorder %s118, %s119
    %p131 = scmp.eq.s32.totalorder %s21, 1
    %p132 = por %p130, %p131
    %p134 = scmp.ne.s32.totalorder %s119, %s133
    %p135 = scmp.eq.s32.totalorder %s21, 0
    %p136 = por %p134, %p135
    %s138 = sadd.s32 %s137, 1
    %p141 = scmp.eq.s32.totalorder %s15, 1
    %p142 = scmp.ne.s32.totalorder %s137, %s139
    %p143 = scmp.eq.s32.totalorder %s15, 0
    %p144 = por %p142, %p143
    %p145 = scmp.ne.s32.totalorder %s137, %s139
    %p146 = scmp.eq.s32.totalorder %s20, 1
    %p147 = por %p145, %p146
    %p148 = scmp.ne.s32.totalorder %s139, %s140
    %p149 = scmp.eq.s32.totalorder %s20, 0
    %p150 = por %p148, %p149
    %p151 = scmp.ne.s32.totalorder %s139, %s140
    %p152 = scmp.eq.s32.totalorder %s21, 1
    %p153 = por %p151, %p152
    %p155 = scmp.ne.s32.totalorder %s140, %s154
    %p156 = scmp.eq.s32.totalorder %s21, 0
    %p157 = por %p155, %p156
    %s159 = sadd.s32 %s158, 1
    %p162 = scmp.eq.s32.totalorder %s15, 1
    %p163 = scmp.ne.s32.totalorder %s158, %s160
    %p164 = scmp.eq.s32.totalorder %s15, 0
    %p165 = por %p163, %p164
    %p166 = scmp.ne.s32.totalorder %s158, %s160
    %p167 = scmp.eq.s32.totalorder %s20, 1
    %p168 = por %p166, %p167
    %p169 = scmp.ne.s32.totalorder %s160, %s161
    %p170 = scmp.eq.s32.totalorder %s20, 0
    %p171 = por %p169, %p170
    %p172 = scmp.ne.s32.totalorder %s160, %s161
    %p173 = scmp.eq.s32.totalorder %s21, 1
    %p174 = por %p172, %p173
    %p176 = scmp.ne.s32.totalorder %s161, %s175
    %p177 = scmp.eq.s32.totalorder %s21, 0
    %p178 = por %p176, %p177
    %s180 = sadd.s32 %s179, 1
    %p183 = scmp.eq.s32.totalorder %s15, 1
    %p184 = scmp.ne.s32.totalorder %s179, %s181
    %p185 = scmp.eq.s32.totalorder %s15, 0
    %p186 = por %p184, %p185
    %p187 = scmp.ne.s32.totalorder %s179, %s181
    %p188 = scmp.eq.s32.totalorder %s20, 1
    %p189 = por %p187, %p188
    %p190 = scmp.ne.s32.totalorder %s181, %s182
    %p191 = scmp.eq.s32.totalorder %s20, 0
    %p192 = por %p190, %p191
    %p193 = scmp.ne.s32.totalorder %s181, %s182
    %p194 = scmp.eq.s32.totalorder %s21, 1
    %p195 = por %p193, %p194
    %p197 = scmp.ne.s32.totalorder %s182, %s196
    %p198 = scmp.eq.s32.totalorder %s21, 0
    %p199 = por %p197, %p198
    %s200 = ssub.s32 %s22, %s34
    %s201 = ssub.s32 %s23, %s30
    %s202 = sor.u32 %s200, %s201
    %p203 = scmp.eq.s32.totalorder %s202, 0
    %s205 = sadd.s32 %s204, 1
    %s206 = scalar_select %p203, %s204, %s205
    %p209 = pneg %p203
    %p210 = scmp.eq.s32.totalorder %s15, 1
    %p211 = por %p209, %p210
    %p212 = scmp.ne.s32.totalorder %s204, %s207
    %p213 = scmp.eq.s32.totalorder %s15, 0
    %p214 = por %p212, %p213
    %p215 = scmp.ne.s32.totalorder %s204, %s207
    %p216 = scmp.eq.s32.totalorder %s20, 1
    %p217 = por %p215, %p216
    %p218 = scmp.ne.s32.totalorder %s207, %s208
    %p219 = scmp.eq.s32.totalorder %s20, 0
    %p220 = por %p218, %p219
    %p221 = scmp.ne.s32.totalorder %s207, %s208
    %p222 = scmp.eq.s32.totalorder %s21, 1
    %p223 = por %p221, %p222
    %p225 = scmp.ne.s32.totalorder %s208, %s224
    %p226 = scmp.eq.s32.totalorder %s21, 0
    %p227 = por %p225, %p226
    %s228 = ssub.s32 %s22, %s34
    %s229 = ssub.s32 %s23, %s30
    %s230 = sor.u32 %s228, %s229
    %p231 = scmp.eq.s32.totalorder %s230, 0
    %s233 = sadd.s32 %s232, 1
    %s234 = scalar_select %p231, %s232, %s233
    %p237 = pneg %p231
    %p238 = scmp.eq.s32.totalorder %s15, 1
    %p239 = por %p237, %p238
    %p240 = scmp.ne.s32.totalorder %s232, %s235
    %p241 = scmp.eq.s32.totalorder %s15, 0
    %p242 = por %p240, %p241
    %p243 = scmp.ne.s32.totalorder %s232, %s235
    %p244 = scmp.eq.s32.totalorder %s20, 1
    %p245 = por %p243, %p244
    %p246 = scmp.ne.s32.totalorder %s235, %s236
    %p247 = scmp.eq.s32.totalorder %s20, 0
    %p248 = por %p246, %p247
    %p249 = scmp.ne.s32.totalorder %s235, %s236
    %p250 = scmp.eq.s32.totalorder %s21, 1
    %p251 = por %p249, %p250
    %p253 = scmp.ne.s32.totalorder %s236, %s252
    %p254 = scmp.eq.s32.totalorder %s21, 0
    %p255 = por %p253, %p254
    %p256 = scmp.le.s32.totalorder 1, %s15
    %p257 = scmp.lt.s32.totalorder %s15, 3
    %p258 = pnand %p256, %p257
    %p259 = pneg %p258
    // Predicated region
    $region9: #{deeplab_recon_fuse_forward.1} parent=5 // pred_check
      _
    $region10: #{deeplab_recon_fuse_forward.1} parent=5 // pred_check_branch
      %261 = sbr.rel (%p258) target = $region12
    $region11: #{deeplab_recon_fuse_forward.1} parent=5 // pred_region
      %s262 = ssub.s32 %s15, 1
      // Predicated region
      $region13: #{deeplab_recon_fuse_forward.1} parent=11 // pred_check
        %p263 = pneg %p108
      $region14: #{deeplab_recon_fuse_forward.1} parent=11 // pred_check_branch
        %265 = sbr.rel (%p263) target = $region16
      $region15: #{deeplab_recon_fuse_forward.1} parent=11 // pred_region
        _
      $region16: #{deeplab_recon_fuse_forward.1} parent=11 // pred_fallthru
        _
      // Predicated region
      $region17: #{deeplab_recon_fuse_forward.1} parent=11 // pred_check
        %p266 = pneg %p129
      $region18: #{deeplab_recon_fuse_forward.1} parent=11 // pred_check_branch
        %268 = sbr.rel (%p266) target = $region20
      $region19: #{deeplab_recon_fuse_forward.1} parent=11 // pred_region
        _
      $region20: #{deeplab_recon_fuse_forward.1} parent=11 // pred_fallthru
        _
      // Predicated region
      $region21: #{deeplab_recon_fuse_forward.1} parent=11 // pred_check
        %p269 = pneg %p150
      $region22: #{deeplab_recon_fuse_forward.1} parent=11 // pred_check_branch
        %271 = sbr.rel (%p269) target = $region24
      $region23: #{deeplab_recon_fuse_forward.1} parent=11 // pred_region
        _
      $region24: #{deeplab_recon_fuse_forward.1} parent=11 // pred_fallthru
        _
      // Predicated region
      $region25: #{deeplab_recon_fuse_forward.1} parent=11 // pred_check
        %p272 = pneg %p171
      $region26: #{deeplab_recon_fuse_forward.1} parent=11 // pred_check_branch
        %274 = sbr.rel (%p272) target = $region28
      $region27: #{deeplab_recon_fuse_forward.1} parent=11 // pred_region
        _
      $region28: #{deeplab_recon_fuse_forward.1} parent=11 // pred_fallthru
        _
      // Predicated region
      $region29: #{deeplab_recon_fuse_forward.1} parent=11 // pred_check
        %p275 = pneg %p192
      $region30: #{deeplab_recon_fuse_forward.1} parent=11 // pred_check_branch
        %277 = sbr.rel (%p275) target = $region32
      $region31: #{deeplab_recon_fuse_forward.1} parent=11 // pred_region
        _
      $region32: #{deeplab_recon_fuse_forward.1} parent=11 // pred_fallthru
        _
    $region12: #{deeplab_recon_fuse_forward.1} parent=5 // pred_fallthru
      _
    %p278 = scmp.lt.s32.totalorder %s15, 2
    // Predicated region
    $region33: #{deeplab_recon_fuse_forward.1} parent=5 // pred_check
      %p279 = pneg %p278
    $region34: #{deeplab_recon_fuse_forward.1} parent=5 // pred_check_branch
      %281 = sbr.rel (%p279) target = $region36
    $region35: #{deeplab_recon_fuse_forward.1} parent=5 // pred_region
      // Predicated region
      $region37: #{deeplab_recon_fuse_forward.1} parent=35 // pred_check
        %p282 = pneg %p49
      $region38: #{deeplab_recon_fuse_forward.1} parent=35 // pred_check_branch
        %284 = sbr.rel (%p282) target = $region40
      $region39: #{deeplab_recon_fuse_forward.1} parent=35 // pred_region
        %s285 = smul.u32 2, %s23
        %s286 = ssub.s32 3, %s285
        %p287 = scmp.lt.s32.totalorder %s286, 2
        %s288 = scalar_select %p287, %s286, 2
        %s289 = smul.u32 64, %s288
        %p290 = scmp.lt.s32.totalorder %s22, 1
        %s291 = scalar_select %p290, %s22, 1
        %p292 = scmp.lt.s32.totalorder %s285, 2
        %s293 = scalar_select %p292, %s285, 2
        %s294 = smul.addr %s291, 3
        %s295 = sadd.s32 %s293, %s294
        %s296 = smul.addr %s295, 4
        %s297 = scalar_lea.vmem %s0, %s296
        %s298 = smul.u32 2, %s23
        %s299 = ssub.s32 3, %s298
        %p300 = scmp.lt.s32.totalorder %s299, 2
        %s301 = scalar_select %p300, %s299, 2
        %s302 = smul.u32 64, %s301
      $region40: #{deeplab_recon_fuse_forward.1} parent=35 // pred_fallthru
        _
      // Predicated region
      $region41: #{deeplab_recon_fuse_forward.1} parent=35 // pred_check
        %p303 = pneg %p81
      $region42: #{deeplab_recon_fuse_forward.1} parent=35 // pred_check_branch
        %305 = sbr.rel (%p303) target = $region44
      $region43: #{deeplab_recon_fuse_forward.1} parent=35 // pred_region
        %s306 = sadd.s32 %s23, 1
        %s307 = smul.u32 %s306, 2
        %p308 = scmp.lt.s32.totalorder %s22, 1
        %s309 = scalar_select %p308, %s22, 1
        %p310 = scmp.lt.s32.totalorder %s307, 2
        %s311 = scalar_select %p310, %s307, 2
        %s312 = smul.addr %s309, 3
        %s313 = sadd.s32 %s311, %s312
        %s314 = smul.addr %s313, 4
        %s315 = scalar_lea.vmem %s1, %s314
        %s316 = sadd.s32 %s23, 1
        %s317 = smul.u32 %s316, 2
      $region44: #{deeplab_recon_fuse_forward.1} parent=35 // pred_fallthru
        _
    $region36: #{deeplab_recon_fuse_forward.1} parent=5 // pred_fallthru
      _
    %p318 = scmp.le.s32.totalorder 1, %s15
    %p319 = scmp.lt.s32.totalorder %s15, 3
    %p320 = pnand %p318, %p319
    %p321 = pneg %p320
    // Predicated region
    $region45: #{deeplab_recon_fuse_forward.1} parent=5 // pred_check
      _
    $region46: #{deeplab_recon_fuse_forward.1} parent=5 // pred_check_branch
      %323 = sbr.rel (%p320) target = $region48
    $region47: #{deeplab_recon_fuse_forward.1} parent=5 // pred_region
      %s324 = ssub.s32 %s15, 1
      %s325 = smul.u32 2, %s25
      %s326 = ssub.s32 3, %s325
      %p327 = scmp.lt.s32.totalorder %s326, 2
      %s328 = scalar_select %p327, %s326, 2
      %s329 = smul.u32 64, %s328
      %p330 = scmp.lt.s32.totalorder %s24, 1
      %s331 = scalar_select %p330, %s24, 1
      %p332 = scmp.lt.s32.totalorder %s325, 2
      %s333 = scalar_select %p332, %s325, 2
      %s334 = smul.addr %s331, 3
      %s335 = sadd.s32 %s333, %s334
      %s336 = smul.addr %s335, 4
      %s337 = scalar_lea.vmem %s0, %s336
      %p338 = pneg %p55
      %p339 = pneg %p52
      %s340 = sadd.s32 %s25, 1
      %s341 = smul.u32 %s340, 2
      %p342 = scmp.lt.s32.totalorder %s24, 1
      %s343 = scalar_select %p342, %s24, 1
      %p344 = scmp.lt.s32.totalorder %s341, 2
      %s345 = scalar_select %p344, %s341, 2
      %s346 = smul.addr %s343, 3
      %s347 = sadd.s32 %s345, %s346
      %s348 = smul.addr %s347, 4
      %s349 = scalar_lea.vmem %s1, %s348
      %p350 = pneg %p87
      %p351 = pneg %p84
      %p352 = pneg %p108
      %p353 = pneg %p105
      %p354 = pneg %p129
      %p355 = pneg %p126
      %p356 = pneg %p150
      %p357 = pneg %p147
      %p358 = pneg %p171
      %p359 = pneg %p168
      %p360 = pneg %p192
      %p361 = pneg %p189
      %p362 = pneg %p220
      %p363 = pneg %p217
      %s364 = smul.u32 2, %s25
      %p365 = scmp.lt.s32.totalorder %s24, 1
      %s366 = scalar_select %p365, %s24, 1
      %p367 = scmp.lt.s32.totalorder %s364, 1
      %s368 = scalar_select %p367, %s364, 1
      %s369 = smul.addr %s366, 2
      %s370 = sadd.s32 %s368, %s369
      %s371 = smul.addr %s370, 2
      %s372 = scalar_lea.vmem %s7, %s371
      %p373 = pneg %p248
      %p374 = pneg %p245
      %s375 = smul.u32 2, %s25
      %p376 = scmp.lt.s32.totalorder %s24, 1
      %s377 = scalar_select %p376, %s24, 1
      %p378 = scmp.lt.s32.totalorder %s375, 1
      %s379 = scalar_select %p378, %s375, 1
      %s380 = smul.addr %s377, 2
      %s381 = sadd.s32 %s379, %s380
      %s382 = scalar_lea.vmem %s8, %s381
      %s383 = smul.u32 2, %s25
      %s384 = ssub.s32 3, %s383
      %p385 = scmp.lt.s32.totalorder %s384, 2
      %s386 = scalar_select %p385, %s384, 2
      %s387 = smul.u32 64, %s386
      %p388 = scmp.lt.s32.totalorder %s24, 1
      %s389 = scalar_select %p388, %s24, 1
      %p390 = scmp.lt.s32.totalorder %s383, 2
      %s391 = scalar_select %p390, %s383, 2
      %s392 = smul.addr %s389, 3
      %s393 = sadd.s32 %s391, %s392
      %s394 = smul.addr %s393, 4
      %s395 = scalar_lea.vmem %s0, %s394
      %s396 = smul.u32 2, %s25
      %s397 = ssub.s32 3, %s396
      %p398 = scmp.lt.s32.totalorder %s397, 2
      %s399 = scalar_select %p398, %s397, 2
      %s400 = smul.u32 64, %s399
      %s401 = sadd.s32 %s25, 1
      %s402 = smul.u32 %s401, 2
      %p403 = scmp.lt.s32.totalorder %s24, 1
      %s404 = scalar_select %p403, %s24, 1
      %p405 = scmp.lt.s32.totalorder %s402, 2
      %s406 = scalar_select %p405, %s402, 2
      %s407 = smul.addr %s404, 3
      %s408 = sadd.s32 %s406, %s407
      %s409 = smul.addr %s408, 4
      %s410 = scalar_lea.vmem %s1, %s409
      %s411 = sadd.s32 %s25, 1
      %s412 = smul.u32 %s411, 2
      %s413 = smul.u32 2, %s25
      %p414 = scmp.lt.s32.totalorder %s24, 1
      %s415 = scalar_select %p414, %s24, 1
      %p416 = scmp.lt.s32.totalorder %s413, 1
      %s417 = scalar_select %p416, %s413, 1
      %s418 = smul.addr %s415, 2
      %s419 = sadd.s32 %s417, %s418
      %s420 = smul.addr %s419, 2
      %s421 = scalar_lea.vmem %s7, %s420
      %s422 = smul.u32 2, %s25
      %s423 = smul.u32 2, %s25
      %p424 = scmp.lt.s32.totalorder %s24, 1
      %s425 = scalar_select %p424, %s24, 1
      %p426 = scmp.lt.s32.totalorder %s423, 1
      %s427 = scalar_select %p426, %s423, 1
      %s428 = smul.addr %s425, 2
      %s429 = sadd.s32 %s427, %s428
      %s430 = scalar_lea.vmem %s8, %s429
      %s431 = smul.u32 2, %s25
      %v433 = vld [vmem:[%s395] sm:$0x77]
      %vm434 = vcmask 1042432
      %vm435 = vsmask.f32 2304
      %vm436 = vmand %vm434, %vm435
      %vm437 = vcmask 1046532
      %vm438 = vsmask.f32 6400
      %vm439 = vmand %vm437, %vm438
      %vm440 = vmor %vm439, %vm436
      %v441 = vld [vmem:[#allocation2] sm:$0x77]
      %v442 = vsel %vm440, %v433, %v441
      %443 = vst [vmem:[#allocation2] sm:$0x77] %v442
      %v444 = vld [vmem:[%s410] sm:$0x7]
      %v445 = vld [vmem:[#allocation2 + $0x8] sm:$0x7]
      %v446 = vsel %vm436, %v444, %v445
      %447 = vst [vmem:[#allocation2 + $0x8] sm:$0x7] %v446
      %v448 = vld [vmem:[%s6] sm:$0x3]
      %v449 = vld [vmem:[#allocation2] sm:$0x77]
      %v452 = vunpack.c.l.s4 1966171168
      %v453 = vunpack.c.0.s8 %v452
      %v454 = vlaneseq
      %v455 = vshrl.u32 %v454, 7
      %v456 = vsub.s32 %v453, %v455
      %v457 = vrot.slane %v448, %v456
      %v458 = vcombine.high %v457, %v457
      %v460 = vunpack.c.l.s4 1966171168
      %v461 = vunpack.c.0.s8 %v460
      %v462 = vlaneseq
      %v463 = vshrl.u32 %v462, 7
      %v464 = vsub.s32 %v461, %v463
      %v465 = vrot.slane %v457, %v464
      %v467 = vunpack.c.l.s4 1966171168
      %v468 = vunpack.c.0.s8 %v467
      %v469 = vlaneseq
      %v470 = vshrl.u32 %v469, 7
      %v471 = vsub.s32 %v468, %v470
      %v472 = vrot.slane %v458, %v471
      %v474 = vpack.i.b16 %v465, %v465
      %v476 = vlaneseq
      %v477 = vshrl.u32 %v476, 7
      %v478 = vsub.s32 0, %v477
      %v479 = vrot.slane %v474, %v478
      %v481 = vpack.i.b16 %v472, %v472
      %v483 = vlaneseq
      %v484 = vshrl.u32 %v483, 7
      %v485 = vsub.s32 0, %v484
      %v486 = vrot.slane %v481, %v485
      %v489 = vunpack.c.l.b16 %v479
      %v490 = vunpack.c.l.b16 %v486
      %v491 = vpack.c.b16 %v490, %v489
      %v493 = vmul.bf16 %v449, %v491
      %v494 = vld [vmem:[%s2] sm:$0xf]
      %v495 = vld [vmem:[#allocation2 + $0x8] sm:$0x7]
      %v497 = vunpack.c.l.b16 %v494
      %v498 = vpack.c.b16 %v497, %v497
      %499 = vrot.lane.b32.xlu0 %v498, 123
      %v500 = vpop.permute.xlu0 %499
      %v503 = vunpack.c.l.b16 %v449
      %v504 = vunpack.c.h.b16 %v449
      %v505 = vunpack.c.l.b16 %v495
      %v506 = vpack.c.b16 %v503, %v503
      %v507 = vpack.c.b16 %v504, %v504
      %v508 = vpack.c.b16 %v505, %v505
      %509 = vrot.lane.b32.xlu0 %v506, 127
      %v510 = vpop.permute.xlu0 %509
      %511 = vrot.lane.b32.xlu0 %v507, 127
      %v512 = vpop.permute.xlu0 %511
      %513 = vrot.lane.b32.xlu0 %v508, 127
      %v514 = vpop.permute.xlu0 %513
      %vm515 = vcmask 1039360
      %v516 = vsel %vm515, %v510, %v512
      %v517 = vsel %vm515, %v512, %v514
      %vm518 = vcmask 39936
      %v520 = vsel %vm518, %v500, 0
      %vm522 = vcmask 1041408
      %vm523 = vcmask 1042432
      %v524 = vsel %vm522, 4294967295, 65535
      %v525 = vsel %vm523, %v524, 0
      %v527 = vand.u32 %v516, %v525
      %v530 = vand.u32 %v517, %v525
      %532 = vmatprep.subr.bf16.mxu0 %v530
      %533 = vmatpush1.bf16.msra.mxu0 %v527
      %534 = vmatprep.subr.bf16.mxu0 0
      %535 = vmatpush1.bf16.msra.mxu0 0
      %536 = vmatprep.subr.bf16.mxu0 0
      %537 = vmatpush1.bf16.msra.mxu0 0
      %538 = vmatprep.subr.bf16.mxu0 0
      %539 = vmatpush1.bf16.msra.mxu0 0
      %540 = vmatprep.subr.bf16.mxu0 0
      %541 = vmatpush1.bf16.msra.mxu0 0
      %542 = vmatprep.subr.bf16.mxu0 0
      %543 = vmatpush1.bf16.msra.mxu0 0
      %544 = vmatprep.subr.bf16.mxu0 0
      %545 = vmatpush1.bf16.msra.mxu0 0
      %546 = vmatprep.subr.bf16.mxu0 0
      %547 = vmatpush1.bf16.msra.mxu0 0
      %548 = vmatprep.subr.bf16.mxu0 0
      %549 = vmatpush1.bf16.msra.mxu0 0
      %550 = vmatprep.subr.bf16.mxu0 0
      %551 = vmatpush1.bf16.msra.mxu0 0
      %552 = vmatprep.subr.bf16.mxu0 0
      %553 = vmatpush1.bf16.msra.mxu0 0
      %554 = vmatprep.subr.bf16.mxu0 0
      %555 = vmatpush1.bf16.msra.mxu0 0
      %556 = vmatprep.subr.bf16.mxu0 0
      %557 = vmatpush1.bf16.msra.mxu0 0
      %558 = vmatprep.subr.bf16.mxu0 0
      %559 = vmatpush1.bf16.msra.mxu0 0
      %560 = vmatprep.subr.bf16.mxu0 0
      %561 = vmatpush1.bf16.msra.mxu0 0
      %562 = vmatprep.subr.bf16.mxu0 0
      %563 = vmatpush1.bf16.msra.mxu0 0
      %564 = vmatprep.mubr.bf16.mxu0 0
      %565 = vmatmul.mubr.bf16.gmra.mrb[0].mxu0 %v520
      %v566 = vpop.f32.mrb[0].mxu0
      %v567 = vadd.f32 0.0, %v566
      %v568 = vpop.f32.mrb[0].mxu0
      %v569 = vadd.f32 0.0, %v568
      %v570 = vpop.f32.mrb[0].mxu0
      %v571 = vpop.f32.mrb[0].mxu0
      %572 = vdwg.mxu0
      %v574 = vunpack.c.l.b16 %v493
      %v575 = vunpack.c.h.b16 %v493
      %v576 = vpack.c.b16 %v574, %v574
      %v577 = vpack.c.b16 %v575, %v575
      %v579 = vsel %vm518, %v494, 0
      %v582 = vand.u32 %v576, %v525
      %v585 = vand.u32 %v577, %v525
      %587 = vmatprep.subr.bf16.mxu0 %v585
      %588 = vmatpush1.bf16.msra.mxu0 %v582
      %589 = vmatprep.subr.bf16.mxu0 0
      %590 = vmatpush1.bf16.msra.mxu0 0
      %591 = vmatprep.subr.bf16.mxu0 0
      %592 = vmatpush1.bf16.msra.mxu0 0
      %593 = vmatprep.subr.bf16.mxu0 0
      %594 = vmatpush1.bf16.msra.mxu0 0
      %595 = vmatprep.subr.bf16.mxu0 0
      %596 = vmatpush1.bf16.msra.mxu0 0
      %597 = vmatprep.subr.bf16.mxu0 0
      %598 = vmatpush1.bf16.msra.mxu0 0
      %599 = vmatprep.subr.bf16.mxu0 0
      %600 = vmatpush1.bf16.msra.mxu0 0
      %601 = vmatprep.subr.bf16.mxu0 0
      %602 = vmatpush1.bf16.msra.mxu0 0
      %603 = vmatprep.subr.bf16.mxu0 0
      %604 = vmatpush1.bf16.msra.mxu0 0
      %605 = vmatprep.subr.bf16.mxu0 0
      %606 = vmatpush1.bf16.msra.mxu0 0
      %607 = vmatprep.subr.bf16.mxu0 0
      %608 = vmatpush1.bf16.msra.mxu0 0
      %609 = vmatprep.subr.bf16.mxu0 0
      %610 = vmatpush1.bf16.msra.mxu0 0
      %611 = vmatprep.subr.bf16.mxu0 0
      %612 = vmatpush1.bf16.msra.mxu0 0
      %613 = vmatprep.subr.bf16.mxu0 0
      %614 = vmatpush1.bf16.msra.mxu0 0
      %615 = vmatprep.subr.bf16.mxu0 0
      %616 = vmatpush1.bf16.msra.mxu0 0
      %617 = vmatprep.subr.bf16.mxu0 0
      %618 = vmatpush1.bf16.msra.mxu0 0
      %619 = vmatprep.mubr.bf16.mxu0 0
      %620 = vmatmul.mubr.bf16.gmra.mrb[0].mxu0 %v579
      %v621 = vpop.f32.mrb[0].mxu0
      %v622 = vadd.f32 %v567, %v621
      %v623 = vpop.f32.mrb[0].mxu0
      %v624 = vadd.f32 %v569, %v623
      %v625 = vpop.f32.mrb[0].mxu0
      %v626 = vpop.f32.mrb[0].mxu0
      %627 = vdwg.mxu0
      %v628 = vshrl.u32 %v465, 16
      %v629 = vpack.i.b16 %v628, %v628
      %v631 = vlaneseq
      %v632 = vshrl.u32 %v631, 7
      %v633 = vsub.s32 0, %v632
      %v634 = vrot.slane %v629, %v633
      %v635 = vshrl.u32 %v472, 16
      %v636 = vpack.i.b16 %v635, %v635
      %v638 = vlaneseq
      %v639 = vshrl.u32 %v638, 7
      %v640 = vsub.s32 0, %v639
      %v641 = vrot.slane %v636, %v640
      %v644 = vunpack.c.l.b16 %v634
      %v645 = vunpack.c.l.b16 %v641
      %v646 = vpack.c.b16 %v645, %v644
      %647 = vrot.lane.b32.xlu0 %v646, 2
      %v648 = vpop.permute.xlu0 %647
      %v649 = vrot.slane %v648, 4
      %vm650 = vcmask 15360
      %v651 = vsel %vm650, %v649, %v648
      %v654 = vmul.bf16 %v449, %v651
      %v655 = vmul.bf16 %v495, %v649
      %v656 = vld [vmem:[%s2] sm:$0xf]
      %v658 = vunpack.c.l.b16 %v656
      %v659 = vpack.c.b16 %v658, %v658
      %660 = vrot.lane.b32.xlu0 %v659, 118
      %v661 = vpop.permute.xlu0 %660
      %v664 = vunpack.c.l.b16 %v654
      %v665 = vunpack.c.h.b16 %v654
      %v666 = vunpack.c.l.b16 %v655
      %v667 = vpack.c.b16 %v664, %v664
      %v668 = vpack.c.b16 %v665, %v665
      %v669 = vpack.c.b16 %v666, %v666
      %670 = vrot.lane.b32.xlu0 %v667, 126
      %v671 = vpop.permute.xlu0 %670
      %672 = vrot.lane.b32.xlu0 %v668, 126
      %v673 = vpop.permute.xlu0 %672
      %674 = vrot.lane.b32.xlu0 %v669, 126
      %v675 = vpop.permute.xlu0 %674
      %vm676 = vcmask 1031168
      %v677 = vsel %vm676, %v671, %v673
      %v678 = vsel %vm676, %v673, %v675
      %v680 = vsel %vm518, %v661, 0
      %v683 = vand.u32 %v677, %v525
      %v686 = vand.u32 %v678, %v525
      %688 = vmatprep.subr.bf16.mxu0 %v686
      %689 = vmatpush1.bf16.msra.mxu0 %v683
      %690 = vmatprep.subr.bf16.mxu0 0
      %691 = vmatpush1.bf16.msra.mxu0 0
      %692 = vmatprep.subr.bf16.mxu0 0
      %693 = vmatpush1.bf16.msra.mxu0 0
      %694 = vmatprep.subr.bf16.mxu0 0
      %695 = vmatpush1.bf16.msra.mxu0 0
      %696 = vmatprep.subr.bf16.mxu0 0
      %697 = vmatpush1.bf16.msra.mxu0 0
      %698 = vmatprep.subr.bf16.mxu0 0
      %699 = vmatpush1.bf16.msra.mxu0 0
      %700 = vmatprep.subr.bf16.mxu0 0
      %701 = vmatpush1.bf16.msra.mxu0 0
      %702 = vmatprep.subr.bf16.mxu0 0
      %703 = vmatpush1.bf16.msra.mxu0 0
      %704 = vmatprep.subr.bf16.mxu0 0
      %705 = vmatpush1.bf16.msra.mxu0 0
      %706 = vmatprep.subr.bf16.mxu0 0
      %707 = vmatpush1.bf16.msra.mxu0 0
      %708 = vmatprep.subr.bf16.mxu0 0
      %709 = vmatpush1.bf16.msra.mxu0 0
      %710 = vmatprep.subr.bf16.mxu0 0
      %711 = vmatpush1.bf16.msra.mxu0 0
      %712 = vmatprep.subr.bf16.mxu0 0
      %713 = vmatpush1.bf16.msra.mxu0 0
      %714 = vmatprep.subr.bf16.mxu0 0
      %715 = vmatpush1.bf16.msra.mxu0 0
      %716 = vmatprep.subr.bf16.mxu0 0
      %717 = vmatpush1.bf16.msra.mxu0 0
      %718 = vmatprep.subr.bf16.mxu0 0
      %719 = vmatpush1.bf16.msra.mxu0 0
      %720 = vmatprep.mubr.bf16.mxu0 0
      %721 = vmatmul.mubr.bf16.gmra.mrb[0].mxu0 %v680
      %v722 = vpop.f32.mrb[0].mxu0
      %v723 = vadd.f32 0.0, %v722
      %v724 = vpop.f32.mrb[0].mxu0
      %v725 = vadd.f32 0.0, %v724
      %v726 = vpop.f32.mrb[0].mxu0
      %v727 = vpop.f32.mrb[0].mxu0
      %728 = vdwg.mxu0
      %v729 = vadd.f32 %v622, %v723
      %v730 = vadd.f32 %v624, %v725
      %v731 = vld [vmem:[#allocation2] sm:$0x77]
      %v732 = vld [vmem:[#allocation2 + $0x8] sm:$0x7]
      %733 = vrot.lane.b32.xlu0 %v491, 16
      %v734 = vpop.permute.xlu0 %733
      %v735 = vrot.slane %v734, 4
      %vm736 = vcmask 130048
      %v737 = vsel %vm736, %v735, %v734
      %v740 = vmul.bf16 %v731, %v737
      %v741 = vmul.bf16 %v732, %v735
      %742 = vrot.lane.b32.xlu0 %v659, 113
      %v743 = vpop.permute.xlu0 %742
      %v746 = vunpack.c.l.b16 %v740
      %v747 = vunpack.c.h.b16 %v740
      %v748 = vunpack.c.l.b16 %v741
      %v749 = vpack.c.b16 %v746, %v746
      %v750 = vpack.c.b16 %v747, %v747
      %v751 = vpack.c.b16 %v748, %v748
      %752 = vrot.lane.b32.xlu0 %v749, 112
      %v753 = vpop.permute.xlu0 %752
      %754 = vrot.lane.b32.xlu0 %v750, 112
      %v755 = vpop.permute.xlu0 %754
      %756 = vrot.lane.b32.xlu0 %v751, 112
      %v757 = vpop.permute.xlu0 %756
      %vm758 = vcmask 916480
      %v759 = vsel %vm758, %v753, %v755
      %v760 = vsel %vm758, %v755, %v757
      %v762 = vsel %vm518, %v743, 0
      %v765 = vand.u32 %v759, %v525
      %v768 = vand.u32 %v760, %v525
      %770 = vmatprep.subr.bf16.mxu0 %v768
      %771 = vmatpush1.bf16.msra.mxu0 %v765
      %772 = vmatprep.subr.bf16.mxu0 0
      %773 = vmatpush1.bf16.msra.mxu0 0
      %774 = vmatprep.subr.bf16.mxu0 0
      %775 = vmatpush1.bf16.msra.mxu0 0
      %776 = vmatprep.subr.bf16.mxu0 0
      %777 = vmatpush1.bf16.msra.mxu0 0
      %778 = vmatprep.subr.bf16.mxu0 0
      %779 = vmatpush1.bf16.msra.mxu0 0
      %780 = vmatprep.subr.bf16.mxu0 0
      %781 = vmatpush1.bf16.msra.mxu0 0
      %782 = vmatprep.subr.bf16.mxu0 0
      %783 = vmatpush1.bf16.msra.mxu0 0
      %784 = vmatprep.subr.bf16.mxu0 0
      %785 = vmatpush1.bf16.msra.mxu0 0
      %786 = vmatprep.subr.bf16.mxu0 0
      %787 = vmatpush1.bf16.msra.mxu0 0
      %788 = vmatprep.subr.bf16.mxu0 0
      %789 = vmatpush1.bf16.msra.mxu0 0
      %790 = vmatprep.subr.bf16.mxu0 0
      %791 = vmatpush1.bf16.msra.mxu0 0
      %792 = vmatprep.subr.bf16.mxu0 0
      %793 = vmatpush1.bf16.msra.mxu0 0
      %794 = vmatprep.subr.bf16.mxu0 0
      %795 = vmatpush1.bf16.msra.mxu0 0
      %796 = vmatprep.subr.bf16.mxu0 0
      %797 = vmatpush1.bf16.msra.mxu0 0
      %798 = vmatprep.subr.bf16.mxu0 0
      %799 = vmatpush1.bf16.msra.mxu0 0
      %800 = vmatprep.subr.bf16.mxu0 0
      %801 = vmatpush1.bf16.msra.mxu0 0
      %802 = vmatprep.mubr.bf16.mxu0 0
      %803 = vmatmul.mubr.bf16.gmra.mrb[0].mxu0 %v762
      %v804 = vpop.f32.mrb[0].mxu0
      %v805 = vadd.f32 0.0, %v804
      %v806 = vpop.f32.mrb[0].mxu0
      %v807 = vadd.f32 0.0, %v806
      %v808 = vpop.f32.mrb[0].mxu0
      %v809 = vpop.f32.mrb[0].mxu0
      %810 = vdwg.mxu0
      %v811 = vadd.f32 %v729, %v805
      %v812 = vadd.f32 %v730, %v807
      %813 = vrot.lane.b32.xlu0 %v659, 108
      %v814 = vpop.permute.xlu0 %813
      %v817 = vunpack.c.l.b16 %v731
      %v818 = vunpack.c.h.b16 %v731
      %v819 = vunpack.c.l.b16 %v732
      %v820 = vpack.c.b16 %v817, %v817
      %v821 = vpack.c.b16 %v818, %v818
      %v822 = vpack.c.b16 %v819, %v819
      %823 = vrot.lane.b32.xlu0 %v820, 111
      %v824 = vpop.permute.xlu0 %823
      %825 = vrot.lane.b32.xlu0 %v821, 111
      %v826 = vpop.permute.xlu0 %825
      %827 = vrot.lane.b32.xlu0 %v822, 111
      %v828 = vpop.permute.xlu0 %827
      %vm829 = vcmask 908288
      %v830 = vsel %vm829, %v824, %v826
      %v831 = vsel %vm829, %v826, %v828
      %v833 = vsel %vm518, %v814, 0
      %v836 = vand.u32 %v830, %v525
      %v839 = vand.u32 %v831, %v525
      %841 = vmatprep.subr.bf16.mxu0 %v839
      %842 = vmatpush1.bf16.msra.mxu0 %v836
      %843 = vmatprep.subr.bf16.mxu0 0
      %844 = vmatpush1.bf16.msra.mxu0 0
      %845 = vmatprep.subr.bf16.mxu0 0
      %846 = vmatpush1.bf16.msra.mxu0 0
      %847 = vmatprep.subr.bf16.mxu0 0
      %848 = vmatpush1.bf16.msra.mxu0 0
      %849 = vmatprep.subr.bf16.mxu0 0
      %850 = vmatpush1.bf16.msra.mxu0 0
      %851 = vmatprep.subr.bf16.mxu0 0
      %852 = vmatpush1.bf16.msra.mxu0 0
      %853 = vmatprep.subr.bf16.mxu0 0
      %854 = vmatpush1.bf16.msra.mxu0 0
      %855 = vmatprep.subr.bf16.mxu0 0
      %856 = vmatpush1.bf16.msra.mxu0 0
      %857 = vmatprep.subr.bf16.mxu0 0
      %858 = vmatpush1.bf16.msra.mxu0 0
      %859 = vmatprep.subr.bf16.mxu0 0
      %860 = vmatpush1.bf16.msra.mxu0 0
      %861 = vmatprep.subr.bf16.mxu0 0
      %862 = vmatpush1.bf16.msra.mxu0 0
      %863 = vmatprep.subr.bf16.mxu0 0
      %864 = vmatpush1.bf16.msra.mxu0 0
      %865 = vmatprep.subr.bf16.mxu0 0
      %866 = vmatpush1.bf16.msra.mxu0 0
      %867 = vmatprep.subr.bf16.mxu0 0
      %868 = vmatpush1.bf16.msra.mxu0 0
      %869 = vmatprep.subr.bf16.mxu0 0
      %870 = vmatpush1.bf16.msra.mxu0 0
      %871 = vmatprep.subr.bf16.mxu0 0
      %872 = vmatpush1.bf16.msra.mxu0 0
      %873 = vmatprep.mubr.bf16.mxu0 0
      %874 = vmatmul.mubr.bf16.gmra.mrb[0].mxu0 %v833
      %v875 = vpop.f32.mrb[0].mxu0
      %v876 = vadd.f32 0.0, %v875
      %v877 = vpop.f32.mrb[0].mxu0
      %v878 = vadd.f32 0.0, %v877
      %v879 = vpop.f32.mrb[0].mxu0
      %v880 = vpop.f32.mrb[0].mxu0
      %881 = vdwg.mxu0
      %v882 = vadd.f32 %v811, %v876
      %v883 = vadd.f32 %v812, %v878
      %884 = vrot.lane.b32.xlu0 %v646, 18
      %v885 = vpop.permute.xlu0 %884
      %v886 = vrot.slane %v885, 4
      %vm887 = vcmask 146432
      %v888 = vsel %vm887, %v886, %v885
      %v891 = vmul.bf16 %v731, %v888
      %v892 = vmul.bf16 %v732, %v886
      %893 = vrot.lane.b32.xlu0 %v659, 103
      %v894 = vpop.permute.xlu0 %893
      %v897 = vunpack.c.l.b16 %v891
      %v898 = vunpack.c.h.b16 %v891
      %v899 = vunpack.c.l.b16 %v892
      %v900 = vpack.c.b16 %v897, %v897
      %v901 = vpack.c.b16 %v898, %v898
      %v902 = vpack.c.b16 %v899, %v899
      %903 = vrot.lane.b32.xlu0 %v900, 110
      %v904 = vpop.permute.xlu0 %903
      %905 = vrot.lane.b32.xlu0 %v901, 110
      %v906 = vpop.permute.xlu0 %905
      %907 = vrot.lane.b32.xlu0 %v902, 110
      %v908 = vpop.permute.xlu0 %907
      %vm909 = vcmask 900096
      %v910 = vsel %vm909, %v904, %v906
      %v911 = vsel %vm909, %v906, %v908
      %v913 = vsel %vm518, %v894, 0
      %v916 = vand.u32 %v910, %v525
      %v919 = vand.u32 %v911, %v525
      %921 = vmatprep.subr.bf16.mxu0 %v919
      %922 = vmatpush1.bf16.msra.mxu0 %v916
      %923 = vmatprep.subr.bf16.mxu0 0
      %924 = vmatpush1.bf16.msra.mxu0 0
      %925 = vmatprep.subr.bf16.mxu0 0
      %926 = vmatpush1.bf16.msra.mxu0 0
      %927 = vmatprep.subr.bf16.mxu0 0
      %928 = vmatpush1.bf16.msra.mxu0 0
      %929 = vmatprep.subr.bf16.mxu0 0
      %930 = vmatpush1.bf16.msra.mxu0 0
      %931 = vmatprep.subr.bf16.mxu0 0
      %932 = vmatpush1.bf16.msra.mxu0 0
      %933 = vmatprep.subr.bf16.mxu0 0
      %934 = vmatpush1.bf16.msra.mxu0 0
      %935 = vmatprep.subr.bf16.mxu0 0
      %936 = vmatpush1.bf16.msra.mxu0 0
      %937 = vmatprep.subr.bf16.mxu0 0
      %938 = vmatpush1.bf16.msra.mxu0 0
      %939 = vmatprep.subr.bf16.mxu0 0
      %940 = vmatpush1.bf16.msra.mxu0 0
      %941 = vmatprep.subr.bf16.mxu0 0
      %942 = vmatpush1.bf16.msra.mxu0 0
      %943 = vmatprep.subr.bf16.mxu0 0
      %944 = vmatpush1.bf16.msra.mxu0 0
      %945 = vmatprep.subr.bf16.mxu0 0
      %946 = vmatpush1.bf16.msra.mxu0 0
      %947 = vmatprep.subr.bf16.mxu0 0
      %948 = vmatpush1.bf16.msra.mxu0 0
      %949 = vmatprep.subr.bf16.mxu0 0
      %950 = vmatpush1.bf16.msra.mxu0 0
      %951 = vmatprep.subr.bf16.mxu0 0
      %952 = vmatpush1.bf16.msra.mxu0 0
      %953 = vmatprep.mubr.bf16.mxu0 0
      %954 = vmatmul.mubr.bf16.gmra.mrb[0].mxu0 %v913
      %v955 = vpop.f32.mrb[0].mxu0
      %v956 = vadd.f32 0.0, %v955
      %v957 = vpop.f32.mrb[0].mxu0
      %v958 = vadd.f32 0.0, %v957
      %v959 = vpop.f32.mrb[0].mxu0
      %v960 = vpop.f32.mrb[0].mxu0
      %961 = vdwg.mxu0
      %v962 = vadd.f32 %v882, %v956
      %v963 = vadd.f32 %v883, %v958
      %964 = vrot.lane.b32.xlu0 %v491, 32
      %v965 = vpop.permute.xlu0 %964
      %v966 = vrot.slane %v965, 4
      %vm967 = vcmask 261120
      %v968 = vsel %vm967, %v966, %v965
      %v971 = vmul.bf16 %v731, %v968
      %v972 = vmul.bf16 %v732, %v966
      %973 = vrot.lane.b32.xlu0 %v659, 98
      %v974 = vpop.permute.xlu0 %973
      %v977 = vunpack.c.l.b16 %v971
      %v978 = vunpack.c.h.b16 %v971
      %v979 = vunpack.c.l.b16 %v972
      %v980 = vpack.c.b16 %v977, %v977
      %v981 = vpack.c.b16 %v978, %v978
      %v982 = vpack.c.b16 %v979, %v979
      %983 = vrot.lane.b32.xlu0 %v980, 96
      %v984 = vpop.permute.xlu0 %983
      %985 = vrot.lane.b32.xlu0 %v981, 96
      %v986 = vpop.permute.xlu0 %985
      %987 = vrot.lane.b32.xlu0 %v982, 96
      %v988 = vpop.permute.xlu0 %987
      %vm989 = vcmask 785408
      %v990 = vsel %vm989, %v984, %v986
      %v991 = vsel %vm989, %v986, %v988
      %v993 = vsel %vm518, %v974, 0
      %v996 = vand.u32 %v990, %v525
      %v999 = vand.u32 %v991, %v525
      %1001 = vmatprep.subr.bf16.mxu0 %v999
      %1002 = vmatpush1.bf16.msra.mxu0 %v996
      %1003 = vmatprep.subr.bf16.mxu0 0
      %1004 = vmatpush1.bf16.msra.mxu0 0
      %1005 = vmatprep.subr.bf16.mxu0 0
      %1006 = vmatpush1.bf16.msra.mxu0 0
      %1007 = vmatprep.subr.bf16.mxu0 0
      %1008 = vmatpush1.bf16.msra.mxu0 0
      %1009 = vmatprep.subr.bf16.mxu0 0
      %1010 = vmatpush1.bf16.msra.mxu0 0
      %1011 = vmatprep.subr.bf16.mxu0 0
      %1012 = vmatpush1.bf16.msra.mxu0 0
      %1013 = vmatprep.subr.bf16.mxu0 0
      %1014 = vmatpush1.bf16.msra.mxu0 0
      %1015 = vmatprep.subr.bf16.mxu0 0
      %1016 = vmatpush1.bf16.msra.mxu0 0
      %1017 = vmatprep.subr.bf16.mxu0 0
      %1018 = vmatpush1.bf16.msra.mxu0 0
      %1019 = vmatprep.subr.bf16.mxu0 0
      %1020 = vmatpush1.bf16.msra.mxu0 0
      %1021 = vmatprep.subr.bf16.mxu0 0
      %1022 = vmatpush1.bf16.msra.mxu0 0
      %1023 = vmatprep.subr.bf16.mxu0 0
      %1024 = vmatpush1.bf16.msra.mxu0 0
      %1025 = vmatprep.subr.bf16.mxu0 0
      %1026 = vmatpush1.bf16.msra.mxu0 0
      %1027 = vmatprep.subr.bf16.mxu0 0
      %1028 = vmatpush1.bf16.msra.mxu0 0
      %1029 = vmatprep.subr.bf16.mxu0 0
      %1030 = vmatpush1.bf16.msra.mxu0 0
      %1031 = vmatprep.subr.bf16.mxu0 0
      %1032 = vmatpush1.bf16.msra.mxu0 0
      %1033 = vmatprep.mubr.bf16.mxu0 0
      %1034 = vmatmul.mubr.bf16.gmra.mrb[0].mxu0 %v993
      %v1035 = vpop.f32.mrb[0].mxu0
      %v1036 = vadd.f32 0.0, %v1035
      %v1037 = vpop.f32.mrb[0].mxu0
      %v1038 = vadd.f32 0.0, %v1037
      %v1039 = vpop.f32.mrb[0].mxu0
      %v1040 = vpop.f32.mrb[0].mxu0
      %1041 = vdwg.mxu0
      %v1042 = vadd.f32 %v962, %v1036
      %v1043 = vadd.f32 %v963, %v1038
      %1044 = vrot.lane.b32.xlu0 %v659, 93
      %v1045 = vpop.permute.xlu0 %1044
      %1046 = vrot.lane.b32.xlu0 %v820, 95
      %v1047 = vpop.permute.xlu0 %1046
      %1048 = vrot.lane.b32.xlu0 %v821, 95
      %v1049 = vpop.permute.xlu0 %1048
      %1050 = vrot.lane.b32.xlu0 %v822, 95
      %v1051 = vpop.permute.xlu0 %1050
      %vm1052 = vcmask 777216
      %v1053 = vsel %vm1052, %v1047, %v1049
      %v1054 = vsel %vm1052, %v1049, %v1051
      %v1056 = vsel %vm518, %v1045, 0
      %v1059 = vand.u32 %v1053, %v525
      %v1062 = vand.u32 %v1054, %v525
      %1064 = vmatprep.subr.bf16.mxu0 %v1062
      %1065 = vmatpush1.bf16.msra.mxu0 %v1059
      %1066 = vmatprep.subr.bf16.mxu0 0
      %1067 = vmatpush1.bf16.msra.mxu0 0
      %1068 = vmatprep.subr.bf16.mxu0 0
      %1069 = vmatpush1.bf16.msra.mxu0 0
      %1070 = vmatprep.subr.bf16.mxu0 0
      %1071 = vmatpush1.bf16.msra.mxu0 0
      %1072 = vmatprep.subr.bf16.mxu0 0
      %1073 = vmatpush1.bf16.msra.mxu0 0
      %1074 = vmatprep.subr.bf16.mxu0 0
      %1075 = vmatpush1.bf16.msra.mxu0 0
      %1076 = vmatprep.subr.bf16.mxu0 0
      %1077 = vmatpush1.bf16.msra.mxu0 0
      %1078 = vmatprep.subr.bf16.mxu0 0
      %1079 = vmatpush1.bf16.msra.mxu0 0
      %1080 = vmatprep.subr.bf16.mxu0 0
      %1081 = vmatpush1.bf16.msra.mxu0 0
      %1082 = vmatprep.subr.bf16.mxu0 0
      %1083 = vmatpush1.bf16.msra.mxu0 0
      %1084 = vmatprep.subr.bf16.mxu0 0
      %1085 = vmatpush1.bf16.msra.mxu0 0
      %1086 = vmatprep.subr.bf16.mxu0 0
      %1087 = vmatpush1.bf16.msra.mxu0 0
      %1088 = vmatprep.subr.bf16.mxu0 0
      %1089 = vmatpush1.bf16.msra.mxu0 0
      %1090 = vmatprep.subr.bf16.mxu0 0
      %1091 = vmatpush1.bf16.msra.mxu0 0
      %1092 = vmatprep.subr.bf16.mxu0 0
      %1093 = vmatpush1.bf16.msra.mxu0 0
      %1094 = vmatprep.subr.bf16.mxu0 0
      %1095 = vmatpush1.bf16.msra.mxu0 0
      %1096 = vmatprep.mubr.bf16.mxu0 0
      %1097 = vmatmul.mubr.bf16.gmra.mrb[0].mxu0 %v1056
      %v1098 = vpop.f32.mrb[0].mxu0
      %v1099 = vadd.f32 0.0, %v1098
      %v1100 = vpop.f32.mrb[0].mxu0
      %v1101 = vadd.f32 0.0, %v1100
      %v1102 = vpop.f32.mrb[0].mxu0
      %v1103 = vpop.f32.mrb[0].mxu0
      %1104 = vdwg.mxu0
      %v1105 = vadd.f32 %v1042, %v1099
      %v1106 = vadd.f32 %v1043, %v1101
      %1107 = vrot.lane.b32.xlu0 %v646, 34
      %v1108 = vpop.permute.xlu0 %1107
      %v1109 = vrot.slane %v1108, 4
      %vm1110 = vcmask 277504
      %v1111 = vsel %vm1110, %v1109, %v1108
      %v1114 = vmul.bf16 %v731, %v1111
      %v1115 = vmul.bf16 %v732, %v1109
      %1116 = vrot.lane.b32.xlu0 %v659, 88
      %v1117 = vpop.permute.xlu0 %1116
      %v1120 = vunpack.c.l.b16 %v1114
      %v1121 = vunpack.c.h.b16 %v1114
      %v1122 = vunpack.c.l.b16 %v1115
      %v1123 = vpack.c.b16 %v1120, %v1120
      %v1124 = vpack.c.b16 %v1121, %v1121
      %v1125 = vpack.c.b16 %v1122, %v1122
      %1126 = vrot.lane.b32.xlu0 %v1123, 94
      %v1127 = vpop.permute.xlu0 %1126
      %1128 = vrot.lane.b32.xlu0 %v1124, 94
      %v1129 = vpop.permute.xlu0 %1128
      %1130 = vrot.lane.b32.xlu0 %v1125, 94
      %v1131 = vpop.permute.xlu0 %1130
      %vm1132 = vcmask 769024
      %v1133 = vsel %vm1132, %v1127, %v1129
      %v1134 = vsel %vm1132, %v1129, %v1131
      %v1136 = vsel %vm518, %v1117, 0
      %v1139 = vand.u32 %v1133, %v525
      %v1142 = vand.u32 %v1134, %v525
      %1144 = vmatprep.subr.bf16.mxu0 %v1142
      %1145 = vmatpush1.bf16.msra.mxu0 %v1139
      %1146 = vmatprep.subr.bf16.mxu0 0
      %1147 = vmatpush1.bf16.msra.mxu0 0
      %1148 = vmatprep.subr.bf16.mxu0 0
      %1149 = vmatpush1.bf16.msra.mxu0 0
      %1150 = vmatprep.subr.bf16.mxu0 0
      %1151 = vmatpush1.bf16.msra.mxu0 0
      %1152 = vmatprep.subr.bf16.mxu0 0
      %1153 = vmatpush1.bf16.msra.mxu0 0
      %1154 = vmatprep.subr.bf16.mxu0 0
      %1155 = vmatpush1.bf16.msra.mxu0 0
      %1156 = vmatprep.subr.bf16.mxu0 0
      %1157 = vmatpush1.bf16.msra.mxu0 0
      %1158 = vmatprep.subr.bf16.mxu0 0
      %1159 = vmatpush1.bf16.msra.mxu0 0
      %1160 = vmatprep.subr.bf16.mxu0 0
      %1161 = vmatpush1.bf16.msra.mxu0 0
      %1162 = vmatprep.subr.bf16.mxu0 0
      %1163 = vmatpush1.bf16.msra.mxu0 0
      %1164 = vmatprep.subr.bf16.mxu0 0
      %1165 = vmatpush1.bf16.msra.mxu0 0
      %1166 = vmatprep.subr.bf16.mxu0 0
      %1167 = vmatpush1.bf16.msra.mxu0 0
      %1168 = vmatprep.subr.bf16.mxu0 0
      %1169 = vmatpush1.bf16.msra.mxu0 0
      %1170 = vmatprep.subr.bf16.mxu0 0
      %1171 = vmatpush1.bf16.msra.mxu0 0
      %1172 = vmatprep.subr.bf16.mxu0 0
      %1173 = vmatpush1.bf16.msra.mxu0 0
      %1174 = vmatprep.subr.bf16.mxu0 0
      %1175 = vmatpush1.bf16.msra.mxu0 0
      %1176 = vmatprep.mubr.bf16.mxu0 0
      %1177 = vmatmul.mubr.bf16.gmra.mrb[0].mxu0 %v1136
      %v1178 = vpop.f32.mrb[0].mxu0
      %v1179 = vadd.f32 0.0, %v1178
      %v1180 = vpop.f32.mrb[0].mxu0
      %v1181 = vadd.f32 0.0, %v1180
      %v1182 = vpop.f32.mrb[0].mxu0
      %v1183 = vpop.f32.mrb[0].mxu0
      %1184 = vdwg.mxu0
      %v1185 = vadd.f32 %v1105, %v1179
      %v1186 = vadd.f32 %v1106, %v1181
      %v1187 = vld [vmem:[%s3] sm:$0xff]
      %1189 = vset.pattern.permute.xlu0 0
      %1190 = vperm.xlu0 %1189, %v1187
      %v1191 = vpop.permute.xlu0 %1190
      %v1193 = vadd.f32 %v1185, %v1191
      %v1194 = vadd.f32 %v1186, %v1191
      %v1195 = vmax.f32 %v1193, 0.0
      %v1196 = vmax.f32 %v1194, 0.0
      %v1197 = vld [vmem:[%s4] sm:$0x1]
      %v1198 = vpack.c.bf16 %v1195, %v1195
      %v1199 = vpack.c.bf16 %v1196, %v1196
      %v1200 = vld [vmem:[%s5] sm:$0x3]
      %1202 = vset.pattern.permute.xlu0 0
      %1203 = vperm.xlu0 %1202, %v1200
      %v1204 = vpop.permute.xlu0 %1203
      %vm1206 = vcmask 64512
      %v1208 = vsel %vm1206, %v1197, 0
      %vm1210 = vcmask 1043456
      %v1212 = vsel %vm1210, %v1198, 0
      %v1215 = vsel %vm1210, %v1199, 0
      %1217 = vmatprep.subr.bf16.mxu0 %v1215
      %1218 = vmatpush1.bf16.msra.mxu0 %v1212
      %1219 = vmatprep.subr.bf16.mxu0 0
      %1220 = vmatpush1.bf16.msra.mxu0 0
      %1221 = vmatprep.subr.bf16.mxu0 0
      %1222 = vmatpush1.bf16.msra.mxu0 0
      %1223 = vmatprep.subr.bf16.mxu0 0
      %1224 = vmatpush1.bf16.msra.mxu0 0
      %1225 = vmatprep.subr.bf16.mxu0 0
      %1226 = vmatpush1.bf16.msra.mxu0 0
      %1227 = vmatprep.subr.bf16.mxu0 0
      %1228 = vmatpush1.bf16.msra.mxu0 0
      %1229 = vmatprep.subr.bf16.mxu0 0
      %1230 = vmatpush1.bf16.msra.mxu0 0
      %1231 = vmatprep.subr.bf16.mxu0 0
      %1232 = vmatpush1.bf16.msra.mxu0 0
      %1233 = vmatprep.subr.bf16.mxu0 0
      %1234 = vmatpush1.bf16.msra.mxu0 0
      %1235 = vmatprep.subr.bf16.mxu0 0
      %1236 = vmatpush1.bf16.msra.mxu0 0
      %1237 = vmatprep.subr.bf16.mxu0 0
      %1238 = vmatpush1.bf16.msra.mxu0 0
      %1239 = vmatprep.subr.bf16.mxu0 0
      %1240 = vmatpush1.bf16.msra.mxu0 0
      %1241 = vmatprep.subr.bf16.mxu0 0
      %1242 = vmatpush1.bf16.msra.mxu0 0
      %1243 = vmatprep.subr.bf16.mxu0 0
      %1244 = vmatpush1.bf16.msra.mxu0 0
      %1245 = vmatprep.subr.bf16.mxu0 0
      %1246 = vmatpush1.bf16.msra.mxu0 0
      %1247 = vmatprep.subr.bf16.mxu0 0
      %1248 = vmatpush1.bf16.msra.mxu0 0
      %1249 = vmatprep.mubr.bf16.mxu0 0
      %1250 = vmatmul.mubr.bf16.gmra.mrb[0].mxu0 %v1208
      %v1251 = vpop.f32.mrb[0].mxu0
      %v1252 = vadd.f32 %v1204, %v1251
      %v1253 = vpop.f32.mrb[0].mxu0
      %v1254 = vadd.f32 %v1204, %v1253
      %v1255 = vpop.f32.mrb[0].mxu0
      %v1256 = vpop.f32.mrb[0].mxu0
      %1257 = vdwg.mxu0
      %v1258 = vmax.f32 %v1252, 0.0
      %v1259 = vmax.f32 %v1254, 0.0
      %v1262 = vrot.slane %v1258, 7
      %v1263 = vrot.slane %v1259, 7
      %v1266 = vsub.f32 %v1258, %v1262
      %v1267 = vsub.f32 %v1259, %v1263
      %v1268 = vmul.f32 %v1266, 1.442695
      %v1269 = vpow.pop %v1268
      %v1270 = vmul.f32 %v1267, 1.442695
      %v1271 = vpow.pop %v1270
      %v1272 = vadd.f32 %v1269, 1.0
      %v1273 = vadd.f32 %v1271, 1.0
      %v1274 = vrcp.pop %v1272
      %v1275 = vrcp.pop %v1273
      %v1276 = vcombine.low %v1258, %v1259
      %v1278 = vunpack.c.l.s4 1983009808
      %v1279 = vunpack.c.0.s8 %v1278
      %v1280 = vlaneseq
      %v1281 = vshrl.u32 %v1280, 7
      %v1282 = vsub.s32 %v1279, %v1281
      %v1283 = vrot.slane %v1276, %v1282
      %1285 = vst [vmem:[%s421] sm:$0xf] %v1283
      %v1288 = vcombine.low %v1274, %v1275
      %v1290 = vunpack.c.l.s4 1966171168
      %v1291 = vunpack.c.0.s8 %v1290
      %v1292 = vlaneseq
      %v1293 = vshrl.u32 %v1292, 7
      %v1294 = vsub.s32 %v1291, %v1293
      %v1295 = vrot.slane %v1288, %v1294
      %v1296 = vcombine.high %v1295, %v1295
      %v1298 = vunpack.c.l.s4 1966171168
      %v1299 = vunpack.c.0.s8 %v1298
      %v1300 = vlaneseq
      %v1301 = vshrl.u32 %v1300, 7
      %v1302 = vsub.s32 %v1299, %v1301
      %v1303 = vrot.slane %v1296, %v1302
      %v1305 = vlaneseq
      %vm1306 = vcmp.ge.s32.totalorder %v1305, 0
      %vm1307 = vcmp.lt.s32.totalorder %v1305, 256
      %vm1308 = vmand %vm1306, %vm1307
      %1309 = vst.msk [vmem:[%s430] sm:$0x3] %vm1308, %v1303
      %s1310 = smul.u32 2, %s25
      %p1311 = scmp.lt.s32.totalorder %s24, 1
      %s1312 = scalar_select %p1311, %s24, 1
      %p1313 = scmp.lt.s32.totalorder %s1310, 1
      %s1314 = scalar_select %p1313, %s1310, 1
      %s1315 = smul.addr %s1312, 2
      %s1316 = sadd.s32 %s1314, %s1315
      %s1317 = smul.addr %s1316, 2
      %s1318 = scalar_lea.vmem %s7, %s1317
      %s1319 = smul.u32 2, %s25
      %p1320 = scmp.lt.s32.totalorder %s24, 1
      %s1321 = scalar_select %p1320, %s24, 1
      %p1322 = scmp.lt.s32.totalorder %s1319, 1
      %s1323 = scalar_select %p1322, %s1319, 1
      %s1324 = smul.addr %s1321, 2
      %s1325 = sadd.s32 %s1323, %s1324
      %s1326 = scalar_lea.vmem %s8, %s1325
      // Predicated region
      $region49: #{deeplab_recon_fuse_forward.1} parent=47 // pred_check
        %p1327 = pneg %p217
      $region50: #{deeplab_recon_fuse_forward.1} parent=47 // pred_check_branch
        %1329 = sbr.rel (%p1327) target = $region52
      $region51: #{deeplab_recon_fuse_forward.1} parent=47 // pred_region
        %s1330 = smul.u32 2, %s25
      $region52: #{deeplab_recon_fuse_forward.1} parent=47 // pred_fallthru
        _
      // Predicated region
      $region53: #{deeplab_recon_fuse_forward.1} parent=47 // pred_check
        %p1331 = pneg %p245
      $region54: #{deeplab_recon_fuse_forward.1} parent=47 // pred_check_branch
        %1333 = sbr.rel (%p1331) target = $region56
      $region55: #{deeplab_recon_fuse_forward.1} parent=47 // pred_region
        %s1334 = smul.u32 2, %s25
      $region56: #{deeplab_recon_fuse_forward.1} parent=47 // pred_fallthru
        _
    $region48: #{deeplab_recon_fuse_forward.1} parent=5 // pred_fallthru
      _
    %p1335 = scmp.le.s32.totalorder 2, %s15
    // Predicated region
    $region57: #{deeplab_recon_fuse_forward.1} parent=5 // pred_check
      %p1336 = pneg %p1335
    $region58: #{deeplab_recon_fuse_forward.1} parent=5 // pred_check_branch
      %1338 = sbr.rel (%p1336) target = $region60
    $region59: #{deeplab_recon_fuse_forward.1} parent=5 // pred_region
      %s1339 = ssub.s32 %s15, 2
      // Predicated region
      $region61: #{deeplab_recon_fuse_forward.1} parent=59 // pred_check
        %p1340 = pneg %p223
      $region62: #{deeplab_recon_fuse_forward.1} parent=59 // pred_check_branch
        %1342 = sbr.rel (%p1340) target = $region64
      $region63: #{deeplab_recon_fuse_forward.1} parent=59 // pred_region
        %s1343 = smul.u32 2, %s27
        %p1344 = scmp.lt.s32.totalorder %s26, 1
        %s1345 = scalar_select %p1344, %s26, 1
        %p1346 = scmp.lt.s32.totalorder %s1343, 1
        %s1347 = scalar_select %p1346, %s1343, 1
        %s1348 = smul.addr %s1345, 2
        %s1349 = sadd.s32 %s1347, %s1348
        %s1350 = smul.addr %s1349, 2
        %s1351 = scalar_lea.vmem %s7, %s1350
      $region64: #{deeplab_recon_fuse_forward.1} parent=59 // pred_fallthru
        _
      // Predicated region
      $region65: #{deeplab_recon_fuse_forward.1} parent=59 // pred_check
        %p1352 = pneg %p251
      $region66: #{deeplab_recon_fuse_forward.1} parent=59 // pred_check_branch
        %1354 = sbr.rel (%p1352) target = $region68
      $region67: #{deeplab_recon_fuse_forward.1} parent=59 // pred_region
        %s1355 = smul.u32 2, %s27
        %p1356 = scmp.lt.s32.totalorder %s26, 1
        %s1357 = scalar_select %p1356, %s26, 1
        %p1358 = scmp.lt.s32.totalorder %s1355, 1
        %s1359 = scalar_select %p1358, %s1355, 1
        %s1360 = smul.addr %s1357, 2
        %s1361 = sadd.s32 %s1359, %s1360
        %s1362 = scalar_lea.vmem %s8, %s1361
      $region68: #{deeplab_recon_fuse_forward.1} parent=59 // pred_fallthru
        _
    $region60: #{deeplab_recon_fuse_forward.1} parent=5 // pred_fallthru
      _
  $region6: #{deeplab_recon_fuse_forward.1} parent=0 // loop_footer
    %s19 = sadd.s32 1, %s15
  $region7: #{deeplab_recon_fuse_forward.1} parent=0 // loop_footer_branch
    %14 = sbr.rel target = $region3
  $region8: #{deeplab_recon_fuse_forward.1} parent=0 // loop_exit
    _

</llo_original>
